<compile_context>
chip_gen: v7x
topology: tpu7x:2x2x1
jax: 0.10.0
libtpu: 0.0.40
codegen_flags: <defaults>
</compile_context>

<pallas_src>
import math

import jax
import jax.numpy as jnp
from jax.experimental import pallas as pl
from jax.experimental.pallas import tpu as pltpu

# ---- small config consistent with SiglipVisionConfig semantics ----
BATCH = 2
SEQ = 8            # num image tokens
HIDDEN = 32        # config.hidden_size
INTERMEDIATE = 64  # config.intermediate_size
N_HEADS = 4        # config.num_attention_heads
D_K = HIDDEN // N_HEADS
N_LAYERS = 2       # config.num_hidden_layers
LN_EPS = 1e-6      # config.layer_norm_eps


def _layernorm(h, w, b):
    # PyTorch nn.LayerNorm: biased variance over last dim.
    mu = jnp.mean(h, axis=-1, keepdims=True)
    var = jnp.mean((h - mu) ** 2, axis=-1, keepdims=True)
    return (h - mu) * jax.lax.rsqrt(var + LN_EPS) * w + b


def _gelu_tanh(x):
    # nn.functional.gelu(x, approximate='tanh')
    c = 0.7978845608028654  # sqrt(2/pi)
    return 0.5 * x * (1.0 + jnp.tanh(c * (x + 0.044715 * x * x * x)))


def encoder_kernel(
    x_ref,
    ln1w_ref, ln1b_ref,
    wqkv_ref, bqkv_ref, wo_ref, bo_ref,
    ln2w_ref, ln2b_ref,
    fc1w_ref, fc1b_ref, fc2w_ref, fc2b_ref,
    out_ref,
):
    # First layer for this batch element: seed the resident hidden state from the input.
    @pl.when(pl.program_id(1) == 0)
    def _():
        out_ref[...] = x_ref[...]

    x = out_ref[...]  # (S, D) float32, resident in VMEM across the layer axis

    # ---- LayerNorm 1 ----
    h = _layernorm(x, ln1w_ref[...], ln1b_ref[...])

    # ---- Multi-head self-attention ----
    # Fused QKV projection: one lane-dense (S, D) @ (D, 3D) MXU matmul.
    # 1/sqrt(D_K) is pre-folded into the Q columns of wqkv / bqkv.
    qkv = jnp.dot(h, wqkv_ref[...], preferred_element_type=jnp.float32) + bqkv_ref[...]

    head_outs = []
    for hh in range(N_HEADS):  # static unroll over heads (H=4): lane slices, no transposes
        q0 = hh * D_K
        qh = qkv[:, q0:q0 + D_K]                               # (S, Dk), already scaled
        kh = qkv[:, HIDDEN + q0:HIDDEN + q0 + D_K]             # (S, Dk)
        vh = qkv[:, 2 * HIDDEN + q0:2 * HIDDEN + q0 + D_K]     # (S, Dk)

        s = jnp.einsum("qd,kd->qk", qh, kh,
                       preferred_element_type=jnp.float32)     # (S, S)
        s = s - jnp.max(s, axis=-1, keepdims=True)
        p = jnp.exp(s)
        p = p / jnp.sum(p, axis=-1, keepdims=True)             # exact softmax
        head_outs.append(jnp.dot(p, vh, preferred_element_type=jnp.float32))  # (S, Dk)

    # Concat over heads -> (S, D), then ONE full-depth output projection matmul.
    o2d = jnp.concatenate(head_outs, axis=-1)
    attn = jnp.dot(o2d, wo_ref[...], preferred_element_type=jnp.float32) + bo_ref[...]
    x = x + attn  # residual 1

    # ---- LayerNorm 2 + MLP (gelu-tanh) ----
    h = _layernorm(x, ln2w_ref[...], ln2b_ref[...])
    h1 = jnp.dot(h, fc1w_ref[...], preferred_element_type=jnp.float32) + fc1b_ref[...]
    h2 = jnp.dot(_gelu_tanh(h1), fc2w_ref[...],
                 preferred_element_type=jnp.float32) + fc2b_ref[...]
    out_ref[...] = (x + h2).astype(out_ref.dtype)  # residual 2, stays resident for layer l+1


def _stack_params(params):
    """Stack per-layer params along a leading (L,) axis, fuse Q/K/V into one (D, 3D)
    weight (+ (1, 3D) bias) and fold 1/sqrt(D_K) into the Q columns.
    Pure wrapper-side layout plumbing (outside the kernel)."""
    def stack(name):
        return jnp.stack([p[name] for p in params], axis=0)

    scale = 1.0 / math.sqrt(D_K)
    wqkv = jnp.concatenate([stack("wq") * scale, stack("wk"), stack("wv")], axis=-1)
    bqkv = jnp.concatenate([stack("bq") * scale, stack("bk"), stack("bv")], axis=-1)

    return [
        stack("ln1_w"), stack("ln1_b"),
        wqkv, bqkv,
        stack("wo"), stack("bo"),
        stack("ln2_w"), stack("ln2_b"),
        stack("fc1_w"), stack("fc1_b"),
        stack("fc2_w"), stack("fc2_b"),
    ]


@jax.jit
def siglip_encoder(x, params):
    B, S, D = x.shape
    weights = _stack_params(params)

    def wspec(a):
        # Stream layer l's slice of each stacked weight; last two dims are full-extent.
        return pl.BlockSpec((pl.Squeezed(),) + a.shape[1:], lambda b, l: (l, 0, 0))

    in_specs = [pl.BlockSpec((pl.Squeezed(), S, D), lambda b, l: (b, 0, 0))]
    in_specs += [wspec(w) for w in weights]

    return pl.pallas_call(
        encoder_kernel,
        out_shape=jax.ShapeDtypeStruct((B, S, D), x.dtype),
        grid=(B, N_LAYERS),
        in_specs=in_specs,
        # Constant along the layer axis -> hidden state stays resident in VMEM across layers.
        out_specs=pl.BlockSpec((pl.Squeezed(), S, D), lambda b, l: (b, 0, 0)),
        compiler_params=pltpu.CompilerParams(
            dimension_semantics=("parallel", "arbitrary")),
    )(x, *weights)


# ---- pure-JAX reference (same math, unfused) for a sanity check ----
def _ref_layer(x, p):
    def ln(h, w, b):
        mu = jnp.mean(h, axis=-1, keepdims=True)
        var = jnp.mean((h - mu) ** 2, axis=-1, keepdims=True)
        return (h - mu) * jax.lax.rsqrt(var + LN_EPS) * w + b

    h = ln(x, p["ln1_w"], p["ln1_b"])
    q = h @ p["wq"] + p["bq"]
    k = h @ p["wk"] + p["bk"]
    v = h @ p["wv"] + p["bv"]
    B, S, D = q.shape
    qh = q.reshape(B, S, N_HEADS, D_K).transpose(0, 2, 1, 3)
    kh = k.reshape(B, S, N_HEADS, D_K).transpose(0, 2, 1, 3)
    vh = v.reshape(B, S, N_HEADS, D_K).transpose(0, 2, 1, 3)
    s = jnp.einsum("bhqd,bhkd->bhqk", qh, kh) / math.sqrt(D_K)
    p_attn = jax.nn.softmax(s, axis=-1)
    o = jnp.einsum("bhqk,bhkd->bhqd", p_attn, vh)
    o = o.transpose(0, 2, 1, 3).reshape(B, S, D)
    o = o @ p["wo"] + p["bo"]
    x = x + o
    h = ln(x, p["ln2_w"], p["ln2_b"])
    h1 = h @ p["fc1_w"] + p["fc1_b"]
    g = _gelu_tanh(h1)
    h2 = g @ p["fc2_w"] + p["fc2_b"]
    return x + h2


def _ref_encoder(x, params):
    h = x
    for p in params:
        h = _ref_layer(h, p)
    return h


def init_params(key):
    params = []
    for li in range(N_LAYERS):
        keys = jax.random.split(jax.random.fold_in(key, li), 8)
        scale = 0.05

        def lin(k, din, dout):
            # weight pre-transposed to (in, out); bias kept 2D (1, out) for TPU layout.
            w = scale * jax.random.normal(k, (din, dout), jnp.float32)
            b = scale * jax.random.normal(jax.random.fold_in(k, 1), (1, dout), jnp.float32)
            return w, b

        wq, bq = lin(keys[0], HIDDEN, HIDDEN)
        wk, bk = lin(keys[1], HIDDEN, HIDDEN)
        wv, bv = lin(keys[2], HIDDEN, HIDDEN)
        wo, bo = lin(keys[3], HIDDEN, HIDDEN)
        fc1_w, fc1_b = lin(keys[4], HIDDEN, INTERMEDIATE)
        fc2_w, fc2_b = lin(keys[5], INTERMEDIATE, HIDDEN)
        ln1_w = jnp.ones((1, HIDDEN), jnp.float32)
        ln1_b = jnp.zeros((1, HIDDEN), jnp.float32)
        ln2_w = jnp.ones((1, HIDDEN), jnp.float32)
        ln2_b = jnp.zeros((1, HIDDEN), jnp.float32)
        params.append(dict(
            ln1_w=ln1_w, ln1_b=ln1_b,
            wq=wq, bq=bq, wk=wk, bk=bk, wv=wv, bv=bv, wo=wo, bo=bo,
            ln2_w=ln2_w, ln2_b=ln2_b,
            fc1_w=fc1_w, fc1_b=fc1_b, fc2_w=fc2_w, fc2_b=fc2_b,
        ))
    return params


if __name__ == "__main__":
    key = jax.random.PRNGKey(0)
    k_x, k_p = jax.random.split(key)
    x = jax.random.normal(k_x, (BATCH, SEQ, HIDDEN), jnp.float32)
    params = init_params(k_p)

    out = siglip_encoder(x, params)
    out = jax.block_until_ready(out)

    ref = _ref_encoder(x, params)
    assert out.shape == (BATCH, SEQ, HIDDEN)
    max_err = float(jnp.max(jnp.abs(out - ref)))
    assert jnp.allclose(out, ref, atol=1e-4, rtol=1e-4), max_err

    print("KERNEL_OK")
</pallas_src>

<mosaic_0001>
module attributes {stable_mosaic.version = 11 : i64} {
  func.func @encoder_kernel(%arg0: i32, %arg1: i32, %arg2: memref<1x8x32xf32, #tpu.memory_space<vmem>>, %arg3: memref<1x1x32xf32, #tpu.memory_space<vmem>>, %arg4: memref<1x1x32xf32, #tpu.memory_space<vmem>>, %arg5: memref<1x32x96xf32, #tpu.memory_space<vmem>>, %arg6: memref<1x1x96xf32, #tpu.memory_space<vmem>>, %arg7: memref<1x32x32xf32, #tpu.memory_space<vmem>>, %arg8: memref<1x1x32xf32, #tpu.memory_space<vmem>>, %arg9: memref<1x1x32xf32, #tpu.memory_space<vmem>>, %arg10: memref<1x1x32xf32, #tpu.memory_space<vmem>>, %arg11: memref<1x32x64xf32, #tpu.memory_space<vmem>>, %arg12: memref<1x1x64xf32, #tpu.memory_space<vmem>>, %arg13: memref<1x64x32xf32, #tpu.memory_space<vmem>>, %arg14: memref<1x1x32xf32, #tpu.memory_space<vmem>>, %arg15: memref<1x8x32xf32, #tpu.memory_space<vmem>>) attributes {dimension_semantics = [#tpu.dimension_semantics<parallel>, #tpu.dimension_semantics<arbitrary>], iteration_bounds = array<i64: 2, 2>, scalar_prefetch = 0 : i64, scratch_operands = 0 : i64, tpu.core_type = #tpu.core_type<tc>, window_params = [{transform_indices = @transform_0, window_bounds = array<i64: 1, 8, 32>}, {transform_indices = @transform_1, window_bounds = array<i64: 1, 1, 32>}, {transform_indices = @transform_2, window_bounds = array<i64: 1, 1, 32>}, {transform_indices = @transform_3, window_bounds = array<i64: 1, 32, 96>}, {transform_indices = @transform_4, window_bounds = array<i64: 1, 1, 96>}, {transform_indices = @transform_5, window_bounds = array<i64: 1, 32, 32>}, {transform_indices = @transform_6, window_bounds = array<i64: 1, 1, 32>}, {transform_indices = @transform_7, window_bounds = array<i64: 1, 1, 32>}, {transform_indices = @transform_8, window_bounds = array<i64: 1, 1, 32>}, {transform_indices = @transform_9, window_bounds = array<i64: 1, 32, 64>}, {transform_indices = @transform_10, window_bounds = array<i64: 1, 1, 64>}, {transform_indices = @transform_11, window_bounds = array<i64: 1, 64, 32>}, {transform_indices = @transform_12, window_bounds = array<i64: 1, 1, 32>}, {transform_indices = @transform_13, window_bounds = array<i64: 1, 8, 32>}]} {
    %c0_i32 = arith.constant 0 : i32
    %0 = arith.cmpi eq, %arg1, %c0_i32 : i32
    %1 = arith.extui %0 : i1 to i32
    %c0_i32_0 = arith.constant 0 : i32
    %2 = arith.cmpi ne, %1, %c0_i32_0 : i32
    scf.if %2 {
      %c0_75 = arith.constant 0 : index
      %c0_76 = arith.constant 0 : index
      %c0_77 = arith.constant 0 : index
      %160 = vector.load %arg2[%c0_75, %c0_76, %c0_77] : memref<1x8x32xf32, #tpu.memory_space<vmem>>, vector<1x8x32xf32>
      %161 = vector.shape_cast %160 : vector<1x8x32xf32> to vector<8x32xf32>
      %c0_78 = arith.constant 0 : index
      %c0_79 = arith.constant 0 : index
      %c0_80 = arith.constant 0 : index
      %162 = vector.load %arg15[%c0_78, %c0_79, %c0_80] : memref<1x8x32xf32, #tpu.memory_space<vmem>>, vector<1x8x32xf32>
      %163 = vector.shape_cast %162 : vector<1x8x32xf32> to vector<8x32xf32>
      %164 = vector.shape_cast %161 : vector<8x32xf32> to vector<1x8x32xf32>
      tpu.vector_store %arg15[%c0_78, %c0_79, %c0_80], %164 {strides = array<i32>} : memref<1x8x32xf32, #tpu.memory_space<vmem>>, vector<1x8x32xf32>,
    } else {
    }
    %c0 = arith.constant 0 : index
    %c0_1 = arith.constant 0 : index
    %c0_2 = arith.constant 0 : index
    %3 = vector.load %arg15[%c0, %c0_1, %c0_2] : memref<1x8x32xf32, #tpu.memory_space<vmem>>, vector<1x8x32xf32>
    %4 = vector.shape_cast %3 : vector<1x8x32xf32> to vector<8x32xf32>
    %c0_3 = arith.constant 0 : index
    %c0_4 = arith.constant 0 : index
    %c0_5 = arith.constant 0 : index
    %5 = vector.load %arg3[%c0_3, %c0_4, %c0_5] : memref<1x1x32xf32, #tpu.memory_space<vmem>>, vector<1x1x32xf32>
    %6 = vector.shape_cast %5 : vector<1x1x32xf32> to vector<1x32xf32>
    %c0_6 = arith.constant 0 : index
    %c0_7 = arith.constant 0 : index
    %c0_8 = arith.constant 0 : index
    %7 = vector.load %arg4[%c0_6, %c0_7, %c0_8] : memref<1x1x32xf32, #tpu.memory_space<vmem>>, vector<1x1x32xf32>
    %8 = vector.shape_cast %7 : vector<1x1x32xf32> to vector<1x32xf32>
    %cst = arith.constant dense<0.000000e+00> : vector<8xf32>
    %9 = vector.multi_reduction <add>, %4, %cst [1] : vector<8x32xf32> to vector<8xf32>
    %10 = vector.shape_cast %9 : vector<8xf32> to vector<8x1xf32>
    %cst_9 = arith.constant 3.200000e+01 : f32
    %11 = vector.broadcast %cst_9 : f32 to vector<8x1xf32>
    %12 = arith.divf %10, %11 : vector<8x1xf32>
    %13 = vector.broadcast %12 : vector<8x1xf32> to vector<8x32xf32>
    %14 = arith.subf %4, %13 : vector<8x32xf32>
    %15 = arith.mulf %14, %14 : vector<8x32xf32>
    %cst_10 = arith.constant dense<0.000000e+00> : vector<8xf32>
    %16 = vector.multi_reduction <add>, %15, %cst_10 [1] : vector<8x32xf32> to vector<8xf32>
    %17 = vector.shape_cast %16 : vector<8xf32> to vector<8x1xf32>
    %cst_11 = arith.constant 3.200000e+01 : f32
    %18 = vector.broadcast %cst_11 : f32 to vector<8x1xf32>
    %19 = arith.divf %17, %18 : vector<8x1xf32>
    %20 = vector.broadcast %12 : vector<8x1xf32> to vector<8x32xf32>
    %21 = arith.subf %4, %20 : vector<8x32xf32>
    %cst_12 = arith.constant 9.99999997E-7 : f32
    %22 = vector.broadcast %cst_12 : f32 to vector<8x1xf32>
    %23 = arith.addf %19, %22 : vector<8x1xf32>
    %24 = math.rsqrt %23 : vector<8x1xf32>
    %25 = vector.broadcast %24 : vector<8x1xf32> to vector<8x32xf32>
    %26 = arith.mulf %21, %25 : vector<8x32xf32>
    %27 = vector.broadcast %6 : vector<1x32xf32> to vector<8x32xf32>
    %28 = arith.mulf %26, %27 : vector<8x32xf32>
    %29 = vector.broadcast %8 : vector<1x32xf32> to vector<8x32xf32>
    %30 = arith.addf %28, %29 : vector<8x32xf32>
    %c0_13 = arith.constant 0 : index
    %c0_14 = arith.constant 0 : index
    %c0_15 = arith.constant 0 : index
    %31 = vector.load %arg5[%c0_13, %c0_14, %c0_15] : memref<1x32x96xf32, #tpu.memory_space<vmem>>, vector<1x32x96xf32>
    %32 = vector.shape_cast %31 : vector<1x32x96xf32> to vector<32x96xf32>
    %cst_16 = arith.constant dense<0.000000e+00> : vector<8x96xf32>
    %33 = tpu.matmul %30, %32, %cst_16 {dimension_numbers = #tpu.dot_dimension_numbers<[1], [0], [0], [1], [0, 0, 1, 1], [], []>} : vector<8x32xf32>, vector<32x96xf32>, vector<8x96xf32> -> vector<8x96xf32>
    %c0_17 = arith.constant 0 : index
    %c0_18 = arith.constant 0 : index
    %c0_19 = arith.constant 0 : index
    %34 = vector.load %arg6[%c0_17, %c0_18, %c0_19] : memref<1x1x96xf32, #tpu.memory_space<vmem>>, vector<1x1x96xf32>
    %35 = vector.shape_cast %34 : vector<1x1x96xf32> to vector<1x96xf32>
    %36 = vector.broadcast %35 : vector<1x96xf32> to vector<8x96xf32>
    %37 = arith.addf %33, %36 : vector<8x96xf32>
    %38 = vector.extract_strided_slice %37 {offsets = [0, 0], sizes = [8, 8], strides = [1, 1]} : vector<8x96xf32> to vector<8x8xf32>
    %39 = vector.extract_strided_slice %37 {offsets = [0, 32], sizes = [8, 8], strides = [1, 1]} : vector<8x96xf32> to vector<8x8xf32>
    %40 = vector.extract_strided_slice %37 {offsets = [0, 64], sizes = [8, 8], strides = [1, 1]} : vector<8x96xf32> to vector<8x8xf32>
    "tpu.trace_start"() <{level = 10 : i32, message = "qd,kd->qk"}> : () -> ()
    %cst_20 = arith.constant dense<0.000000e+00> : vector<8x8xf32>
    %41 = tpu.matmul %38, %39, %cst_20 {dimension_numbers = #tpu.dot_dimension_numbers<[1], [1], [0], [0], [0, 0, 1, 0], [], []>} : vector<8x8xf32>, vector<8x8xf32>, vector<8x8xf32> -> vector<8x8xf32>
    "tpu.trace_stop"() : () -> ()
    %cst_21 = arith.constant dense<0xFF800000> : vector<8xf32>
    %42 = vector.multi_reduction <maximumf>, %41, %cst_21 [1] : vector<8x8xf32> to vector<8xf32>
    %43 = vector.shape_cast %42 : vector<8xf32> to vector<8x1xf32>
    %44 = vector.broadcast %43 : vector<8x1xf32> to vector<8x8xf32>
    %45 = arith.subf %41, %44 : vector<8x8xf32>
    %46 = math.exp %45 : vector<8x8xf32>
    %cst_22 = arith.constant dense<0.000000e+00> : vector<8xf32>
    %47 = vector.multi_reduction <add>, %46, %cst_22 [1] : vector<8x8xf32> to vector<8xf32>
    %48 = vector.shape_cast %47 : vector<8xf32> to vector<8x1xf32>
    %49 = vector.broadcast %48 : vector<8x1xf32> to vector<8x8xf32>
    %50 = arith.divf %46, %49 : vector<8x8xf32>
    %cst_23 = arith.constant dense<0.000000e+00> : vector<8x8xf32>
    %51 = tpu.matmul %50, %40, %cst_23 {dimension_numbers = #tpu.dot_dimension_numbers<[1], [0], [0], [1], [0, 0, 1, 1], [], []>} : vector<8x8xf32>, vector<8x8xf32>, vector<8x8xf32> -> vector<8x8xf32>
    %52 = vector.extract_strided_slice %37 {offsets = [0, 8], sizes = [8, 8], strides = [1, 1]} : vector<8x96xf32> to vector<8x8xf32>
    %53 = vector.extract_strided_slice %37 {offsets = [0, 40], sizes = [8, 8], strides = [1, 1]} : vector<8x96xf32> to vector<8x8xf32>
    %54 = vector.extract_strided_slice %37 {offsets = [0, 72], sizes = [8, 8], strides = [1, 1]} : vector<8x96xf32> to vector<8x8xf32>
    "tpu.trace_start"() <{level = 10 : i32, message = "qd,kd->qk"}> : () -> ()
    %cst_24 = arith.constant dense<0.000000e+00> : vector<8x8xf32>
    %55 = tpu.matmul %52, %53, %cst_24 {dimension_numbers = #tpu.dot_dimension_numbers<[1], [1], [0], [0], [0, 0, 1, 0], [], []>} : vector<8x8xf32>, vector<8x8xf32>, vector<8x8xf32> -> vector<8x8xf32>
    "tpu.trace_stop"() : () -> ()
    %cst_25 = arith.constant dense<0xFF800000> : vector<8xf32>
    %56 = vector.multi_reduction <maximumf>, %55, %cst_25 [1] : vector<8x8xf32> to vector<8xf32>
    %57 = vector.shape_cast %56 : vector<8xf32> to vector<8x1xf32>
    %58 = vector.broadcast %57 : vector<8x1xf32> to vector<8x8xf32>
    %59 = arith.subf %55, %58 : vector<8x8xf32>
    %60 = math.exp %59 : vector<8x8xf32>
    %cst_26 = arith.constant dense<0.000000e+00> : vector<8xf32>
    %61 = vector.multi_reduction <add>, %60, %cst_26 [1] : vector<8x8xf32> to vector<8xf32>
    %62 = vector.shape_cast %61 : vector<8xf32> to vector<8x1xf32>
    %63 = vector.broadcast %62 : vector<8x1xf32> to vector<8x8xf32>
    %64 = arith.divf %60, %63 : vector<8x8xf32>
    %cst_27 = arith.constant dense<0.000000e+00> : vector<8x8xf32>
    %65 = tpu.matmul %64, %54, %cst_27 {dimension_numbers = #tpu.dot_dimension_numbers<[1], [0], [0], [1], [0, 0, 1, 1], [], []>} : vector<8x8xf32>, vector<8x8xf32>, vector<8x8xf32> -> vector<8x8xf32>
    %66 = vector.extract_strided_slice %37 {offsets = [0, 16], sizes = [8, 8], strides = [1, 1]} : vector<8x96xf32> to vector<8x8xf32>
    %67 = vector.extract_strided_slice %37 {offsets = [0, 48], sizes = [8, 8], strides = [1, 1]} : vector<8x96xf32> to vector<8x8xf32>
    %68 = vector.extract_strided_slice %37 {offsets = [0, 80], sizes = [8, 8], strides = [1, 1]} : vector<8x96xf32> to vector<8x8xf32>
    "tpu.trace_start"() <{level = 10 : i32, message = "qd,kd->qk"}> : () -> ()
    %cst_28 = arith.constant dense<0.000000e+00> : vector<8x8xf32>
    %69 = tpu.matmul %66, %67, %cst_28 {dimension_numbers = #tpu.dot_dimension_numbers<[1], [1], [0], [0], [0, 0, 1, 0], [], []>} : vector<8x8xf32>, vector<8x8xf32>, vector<8x8xf32> -> vector<8x8xf32>
    "tpu.trace_stop"() : () -> ()
    %cst_29 = arith.constant dense<0xFF800000> : vector<8xf32>
    %70 = vector.multi_reduction <maximumf>, %69, %cst_29 [1] : vector<8x8xf32> to vector<8xf32>
    %71 = vector.shape_cast %70 : vector<8xf32> to vector<8x1xf32>
    %72 = vector.broadcast %71 : vector<8x1xf32> to vector<8x8xf32>
    %73 = arith.subf %69, %72 : vector<8x8xf32>
    %74 = math.exp %73 : vector<8x8xf32>
    %cst_30 = arith.constant dense<0.000000e+00> : vector<8xf32>
    %75 = vector.multi_reduction <add>, %74, %cst_30 [1] : vector<8x8xf32> to vector<8xf32>
    %76 = vector.shape_cast %75 : vector<8xf32> to vector<8x1xf32>
    %77 = vector.broadcast %76 : vector<8x1xf32> to vector<8x8xf32>
    %78 = arith.divf %74, %77 : vector<8x8xf32>
    %cst_31 = arith.constant dense<0.000000e+00> : vector<8x8xf32>
    %79 = tpu.matmul %78, %68, %cst_31 {dimension_numbers = #tpu.dot_dimension_numbers<[1], [0], [0], [1], [0, 0, 1, 1], [], []>} : vector<8x8xf32>, vector<8x8xf32>, vector<8x8xf32> -> vector<8x8xf32>
    %80 = vector.extract_strided_slice %37 {offsets = [0, 24], sizes = [8, 8], strides = [1, 1]} : vector<8x96xf32> to vector<8x8xf32>
    %81 = vector.extract_strided_slice %37 {offsets = [0, 56], sizes = [8, 8], strides = [1, 1]} : vector<8x96xf32> to vector<8x8xf32>
    %82 = vector.extract_strided_slice %37 {offsets = [0, 88], sizes = [8, 8], strides = [1, 1]} : vector<8x96xf32> to vector<8x8xf32>
    "tpu.trace_start"() <{level = 10 : i32, message = "qd,kd->qk"}> : () -> ()
    %cst_32 = arith.constant dense<0.000000e+00> : vector<8x8xf32>
    %83 = tpu.matmul %80, %81, %cst_32 {dimension_numbers = #tpu.dot_dimension_numbers<[1], [1], [0], [0], [0, 0, 1, 0], [], []>} : vector<8x8xf32>, vector<8x8xf32>, vector<8x8xf32> -> vector<8x8xf32>
    "tpu.trace_stop"() : () -> ()
    %cst_33 = arith.constant dense<0xFF800000> : vector<8xf32>
    %84 = vector.multi_reduction <maximumf>, %83, %cst_33 [1] : vector<8x8xf32> to vector<8xf32>
    %85 = vector.shape_cast %84 : vector<8xf32> to vector<8x1xf32>
    %86 = vector.broadcast %85 : vector<8x1xf32> to vector<8x8xf32>
    %87 = arith.subf %83, %86 : vector<8x8xf32>
    %88 = math.exp %87 : vector<8x8xf32>
    %cst_34 = arith.constant dense<0.000000e+00> : vector<8xf32>
    %89 = vector.multi_reduction <add>, %88, %cst_34 [1] : vector<8x8xf32> to vector<8xf32>
    %90 = vector.shape_cast %89 : vector<8xf32> to vector<8x1xf32>
    %91 = vector.broadcast %90 : vector<8x1xf32> to vector<8x8xf32>
    %92 = arith.divf %88, %91 : vector<8x8xf32>
    %cst_35 = arith.constant dense<0.000000e+00> : vector<8x8xf32>
    %93 = tpu.matmul %92, %82, %cst_35 {dimension_numbers = #tpu.dot_dimension_numbers<[1], [0], [0], [1], [0, 0, 1, 1], [], []>} : vector<8x8xf32>, vector<8x8xf32>, vector<8x8xf32> -> vector<8x8xf32>
    %94 = tpu.concatenate %51, %65, %79, %93 in 1 : vector<8x8xf32>, vector<8x8xf32>, vector<8x8xf32>, vector<8x8xf32> -> vector<8x32xf32>
    %c0_36 = arith.constant 0 : index
    %c0_37 = arith.constant 0 : index
    %c0_38 = arith.constant 0 : index
    %95 = vector.load %arg7[%c0_36, %c0_37, %c0_38] : memref<1x32x32xf32, #tpu.memory_space<vmem>>, vector<1x32x32xf32>
    %96 = vector.shape_cast %95 : vector<1x32x32xf32> to vector<32x32xf32>
    %cst_39 = arith.constant dense<0.000000e+00> : vector<8x32xf32>
    %97 = tpu.matmul %94, %96, %cst_39 {dimension_numbers = #tpu.dot_dimension_numbers<[1], [0], [0], [1], [0, 0, 1, 1], [], []>} : vector<8x32xf32>, vector<32x32xf32>, vector<8x32xf32> -> vector<8x32xf32>
    %c0_40 = arith.constant 0 : index
    %c0_41 = arith.constant 0 : index
    %c0_42 = arith.constant 0 : index
    %98 = vector.load %arg8[%c0_40, %c0_41, %c0_42] : memref<1x1x32xf32, #tpu.memory_space<vmem>>, vector<1x1x32xf32>
    %99 = vector.shape_cast %98 : vector<1x1x32xf32> to vector<1x32xf32>
    %100 = vector.broadcast %99 : vector<1x32xf32> to vector<8x32xf32>
    %101 = arith.addf %97, %100 : vector<8x32xf32>
    %102 = arith.addf %4, %101 : vector<8x32xf32>
    %c0_43 = arith.constant 0 : index
    %c0_44 = arith.constant 0 : index
    %c0_45 = arith.constant 0 : index
    %103 = vector.load %arg9[%c0_43, %c0_44, %c0_45] : memref<1x1x32xf32, #tpu.memory_space<vmem>>, vector<1x1x32xf32>
    %104 = vector.shape_cast %103 : vector<1x1x32xf32> to vector<1x32xf32>
    %c0_46 = arith.constant 0 : index
    %c0_47 = arith.constant 0 : index
    %c0_48 = arith.constant 0 : index
    %105 = vector.load %arg10[%c0_46, %c0_47, %c0_48] : memref<1x1x32xf32, #tpu.memory_space<vmem>>, vector<1x1x32xf32>
    %106 = vector.shape_cast %105 : vector<1x1x32xf32> to vector<1x32xf32>
    %cst_49 = arith.constant dense<0.000000e+00> : vector<8xf32>
    %107 = vector.multi_reduction <add>, %102, %cst_49 [1] : vector<8x32xf32> to vector<8xf32>
    %108 = vector.shape_cast %107 : vector<8xf32> to vector<8x1xf32>
    %cst_50 = arith.constant 3.200000e+01 : f32
    %109 = vector.broadcast %cst_50 : f32 to vector<8x1xf32>
    %110 = arith.divf %108, %109 : vector<8x1xf32>
    %111 = vector.broadcast %110 : vector<8x1xf32> to vector<8x32xf32>
    %112 = arith.subf %102, %111 : vector<8x32xf32>
    %113 = arith.mulf %112, %112 : vector<8x32xf32>
    %cst_51 = arith.constant dense<0.000000e+00> : vector<8xf32>
    %114 = vector.multi_reduction <add>, %113, %cst_51 [1] : vector<8x32xf32> to vector<8xf32>
    %115 = vector.shape_cast %114 : vector<8xf32> to vector<8x1xf32>
    %cst_52 = arith.constant 3.200000e+01 : f32
    %116 = vector.broadcast %cst_52 : f32 to vector<8x1xf32>
    %117 = arith.divf %115, %116 : vector<8x1xf32>
    %118 = vector.broadcast %110 : vector<8x1xf32> to vector<8x32xf32>
    %119 = arith.subf %102, %118 : vector<8x32xf32>
    %cst_53 = arith.constant 9.99999997E-7 : f32
    %120 = vector.broadcast %cst_53 : f32 to vector<8x1xf32>
    %121 = arith.addf %117, %120 : vector<8x1xf32>
    %122 = math.rsqrt %121 : vector<8x1xf32>
    %123 = vector.broadcast %122 : vector<8x1xf32> to vector<8x32xf32>
    %124 = arith.mulf %119, %123 : vector<8x32xf32>
    %125 = vector.broadcast %104 : vector<1x32xf32> to vector<8x32xf32>
    %126 = arith.mulf %124, %125 : vector<8x32xf32>
    %127 = vector.broadcast %106 : vector<1x32xf32> to vector<8x32xf32>
    %128 = arith.addf %126, %127 : vector<8x32xf32>
    %c0_54 = arith.constant 0 : index
    %c0_55 = arith.constant 0 : index
    %c0_56 = arith.constant 0 : index
    %129 = vector.load %arg11[%c0_54, %c0_55, %c0_56] : memref<1x32x64xf32, #tpu.memory_space<vmem>>, vector<1x32x64xf32>
    %130 = vector.shape_cast %129 : vector<1x32x64xf32> to vector<32x64xf32>
    %cst_57 = arith.constant dense<0.000000e+00> : vector<8x64xf32>
    %131 = tpu.matmul %128, %130, %cst_57 {dimension_numbers = #tpu.dot_dimension_numbers<[1], [0], [0], [1], [0, 0, 1, 1], [], []>} : vector<8x32xf32>, vector<32x64xf32>, vector<8x64xf32> -> vector<8x64xf32>
    %c0_58 = arith.constant 0 : index
    %c0_59 = arith.constant 0 : index
    %c0_60 = arith.constant 0 : index
    %132 = vector.load %arg12[%c0_58, %c0_59, %c0_60] : memref<1x1x64xf32, #tpu.memory_space<vmem>>, vector<1x1x64xf32>
    %133 = vector.shape_cast %132 : vector<1x1x64xf32> to vector<1x64xf32>
    %134 = vector.broadcast %133 : vector<1x64xf32> to vector<8x64xf32>
    %135 = arith.addf %131, %134 : vector<8x64xf32>
    %cst_61 = arith.constant 5.000000e-01 : f32
    %136 = vector.broadcast %cst_61 : f32 to vector<8x64xf32>
    %137 = arith.mulf %136, %135 : vector<8x64xf32>
    %cst_62 = arith.constant 4.471500e-02 : f32
    %138 = vector.broadcast %cst_62 : f32 to vector<8x64xf32>
    %139 = arith.mulf %138, %135 : vector<8x64xf32>
    %140 = arith.mulf %139, %135 : vector<8x64xf32>
    %141 = arith.mulf %140, %135 : vector<8x64xf32>
    %142 = arith.addf %135, %141 : vector<8x64xf32>
    %cst_63 = arith.constant 0.797884583 : f32
    %143 = vector.broadcast %cst_63 : f32 to vector<8x64xf32>
    %144 = arith.mulf %143, %142 : vector<8x64xf32>
    %145 = math.tanh %144 : vector<8x64xf32>
    %cst_64 = arith.constant 1.000000e+00 : f32
    %146 = vector.broadcast %cst_64 : f32 to vector<8x64xf32>
    %147 = arith.addf %146, %145 : vector<8x64xf32>
    %148 = arith.mulf %137, %147 : vector<8x64xf32>
    %c0_65 = arith.constant 0 : index
    %c0_66 = arith.constant 0 : index
    %c0_67 = arith.constant 0 : index
    %149 = vector.load %arg13[%c0_65, %c0_66, %c0_67] : memref<1x64x32xf32, #tpu.memory_space<vmem>>, vector<1x64x32xf32>
    %150 = vector.shape_cast %149 : vector<1x64x32xf32> to vector<64x32xf32>
    %cst_68 = arith.constant dense<0.000000e+00> : vector<8x32xf32>
    %151 = tpu.matmul %148, %150, %cst_68 {dimension_numbers = #tpu.dot_dimension_numbers<[1], [0], [0], [1], [0, 0, 1, 1], [], []>} : vector<8x64xf32>, vector<64x32xf32>, vector<8x32xf32> -> vector<8x32xf32>
    %c0_69 = arith.constant 0 : index
    %c0_70 = arith.constant 0 : index
    %c0_71 = arith.constant 0 : index
    %152 = vector.load %arg14[%c0_69, %c0_70, %c0_71] : memref<1x1x32xf32, #tpu.memory_space<vmem>>, vector<1x1x32xf32>
    %153 = vector.shape_cast %152 : vector<1x1x32xf32> to vector<1x32xf32>
    %154 = vector.broadcast %153 : vector<1x32xf32> to vector<8x32xf32>
    %155 = arith.addf %151, %154 : vector<8x32xf32>
    %156 = arith.addf %102, %155 : vector<8x32xf32>
    %c0_72 = arith.constant 0 : index
    %c0_73 = arith.constant 0 : index
    %c0_74 = arith.constant 0 : index
    %157 = vector.load %arg15[%c0_72, %c0_73, %c0_74] : memref<1x8x32xf32, #tpu.memory_space<vmem>>, vector<1x8x32xf32>
    %158 = vector.shape_cast %157 : vector<1x8x32xf32> to vector<8x32xf32>
    %159 = vector.shape_cast %156 : vector<8x32xf32> to vector<1x8x32xf32>
    tpu.vector_store %arg15[%c0_72, %c0_73, %c0_74], %159 {strides = array<i32>} : memref<1x8x32xf32, #tpu.memory_space<vmem>>, vector<1x8x32xf32>,
    return
  }
  func.func @transform_0(%arg0: i32, %arg1: i32) -> (i32, i32, i32) {
    %c0_i32 = arith.constant 0 : i32
    %c0_i32_0 = arith.constant 0 : i32
    %c0_i32_1 = arith.constant 0 : i32
    return %arg0, %c0_i32, %c0_i32_0 : i32, i32, i32
  }
  func.func @transform_1(%arg0: i32, %arg1: i32) -> (i32, i32, i32) {
    %c0_i32 = arith.constant 0 : i32
    %c0_i32_0 = arith.constant 0 : i32
    %c0_i32_1 = arith.constant 0 : i32
    return %arg1, %c0_i32, %c0_i32_0 : i32, i32, i32
  }
  func.func @transform_2(%arg0: i32, %arg1: i32) -> (i32, i32, i32) {
    %c0_i32 = arith.constant 0 : i32
    %c0_i32_0 = arith.constant 0 : i32
    %c0_i32_1 = arith.constant 0 : i32
    return %arg1, %c0_i32, %c0_i32_0 : i32, i32, i32
  }
  func.func @transform_3(%arg0: i32, %arg1: i32) -> (i32, i32, i32) {
    %c0_i32 = arith.constant 0 : i32
    %c0_i32_0 = arith.constant 0 : i32
    %c0_i32_1 = arith.constant 0 : i32
    return %arg1, %c0_i32, %c0_i32_0 : i32, i32, i32
  }
  func.func @transform_4(%arg0: i32, %arg1: i32) -> (i32, i32, i32) {
    %c0_i32 = arith.constant 0 : i32
    %c0_i32_0 = arith.constant 0 : i32
    %c0_i32_1 = arith.constant 0 : i32
    return %arg1, %c0_i32, %c0_i32_0 : i32, i32, i32
  }
  func.func @transform_5(%arg0: i32, %arg1: i32) -> (i32, i32, i32) {
    %c0_i32 = arith.constant 0 : i32
    %c0_i32_0 = arith.constant 0 : i32
    %c0_i32_1 = arith.constant 0 : i32
    return %arg1, %c0_i32, %c0_i32_0 : i32, i32, i32
  }
  func.func @transform_6(%arg0: i32, %arg1: i32) -> (i32, i32, i32) {
    %c0_i32 = arith.constant 0 : i32
    %c0_i32_0 = arith.constant 0 : i32
    %c0_i32_1 = arith.constant 0 : i32
    return %arg1, %c0_i32, %c0_i32_0 : i32, i32, i32
  }
  func.func @transform_7(%arg0: i32, %arg1: i32) -> (i32, i32, i32) {
    %c0_i32 = arith.constant 0 : i32
    %c0_i32_0 = arith.constant 0 : i32
    %c0_i32_1 = arith.constant 0 : i32
    return %arg1, %c0_i32, %c0_i32_0 : i32, i32, i32
  }
  func.func @transform_8(%arg0: i32, %arg1: i32) -> (i32, i32, i32) {
    %c0_i32 = arith.constant 0 : i32
    %c0_i32_0 = arith.constant 0 : i32
    %c0_i32_1 = arith.constant 0 : i32
    return %arg1, %c0_i32, %c0_i32_0 : i32, i32, i32
  }
  func.func @transform_9(%arg0: i32, %arg1: i32) -> (i32, i32, i32) {
    %c0_i32 = arith.constant 0 : i32
    %c0_i32_0 = arith.constant 0 : i32
    %c0_i32_1 = arith.constant 0 : i32
    return %arg1, %c0_i32, %c0_i32_0 : i32, i32, i32
  }
  func.func @transform_10(%arg0: i32, %arg1: i32) -> (i32, i32, i32) {
    %c0_i32 = arith.constant 0 : i32
    %c0_i32_0 = arith.constant 0 : i32
    %c0_i32_1 = arith.constant 0 : i32
    return %arg1, %c0_i32, %c0_i32_0 : i32, i32, i32
  }
  func.func @transform_11(%arg0: i32, %arg1: i32) -> (i32, i32, i32) {
    %c0_i32 = arith.constant 0 : i32
    %c0_i32_0 = arith.constant 0 : i32
    %c0_i32_1 = arith.constant 0 : i32
    return %arg1, %c0_i32, %c0_i32_0 : i32, i32, i32
  }
  func.func @transform_12(%arg0: i32, %arg1: i32) -> (i32, i32, i32) {
    %c0_i32 = arith.constant 0 : i32
    %c0_i32_0 = arith.constant 0 : i32
    %c0_i32_1 = arith.constant 0 : i32
    return %arg1, %c0_i32, %c0_i32_0 : i32, i32, i32
  }
  func.func @transform_13(%arg0: i32, %arg1: i32) -> (i32, i32, i32) {
    %c0_i32 = arith.constant 0 : i32
    %c0_i32_0 = arith.constant 0 : i32
    %c0_i32_1 = arith.constant 0 : i32
    return %arg0, %c0_i32, %c0_i32_0 : i32, i32, i32
  }
}

</mosaic_0001>

<llo_original>
// kernel: siglip_encoder.1
$region0: #{siglip_encoder.1}
  #allocation0 [shape = 'u32[]', space=smem, size = 0x4, offset = 0x4, fixed_abs, tag = 'smem constant byte address 0x4 - core index']
  #allocation1 [shape = 'u32[144,128]{1,0:T(1,128)}', space=vmem, size = 0x12000, scoped, tag = 'internal scratch']
  %s0 = inlined_call_operand.vmem [shape: f32[2,8,32], index: 0, kind: input, shape index: {}]
  %s1 = inlined_call_operand.vmem [shape: f32[2,1,32], index: 1, kind: input, shape index: {}]
  %s2 = inlined_call_operand.vmem [shape: f32[2,1,32], index: 2, kind: input, shape index: {}]
  %s3 = inlined_call_operand.vmem [shape: f32[2,32,96], index: 3, kind: input, shape index: {}]
  %s4 = inlined_call_operand.vmem [shape: f32[2,1,96], index: 4, kind: input, shape index: {}]
  %s5 = inlined_call_operand.vmem [shape: f32[2,32,32], index: 5, kind: input, shape index: {}]
  %s6 = inlined_call_operand.vmem [shape: f32[2,1,32], index: 6, kind: input, shape index: {}]
  %s7 = inlined_call_operand.vmem [shape: f32[2,1,32], index: 7, kind: input, shape index: {}]
  %s8 = inlined_call_operand.vmem [shape: f32[2,1,32], index: 8, kind: input, shape index: {}]
  %s9 = inlined_call_operand.vmem [shape: f32[2,32,64], index: 9, kind: input, shape index: {}]
  %s10 = inlined_call_operand.vmem [shape: f32[2,1,64], index: 10, kind: input, shape index: {}]
  %s11 = inlined_call_operand.vmem [shape: f32[2,64,32], index: 11, kind: input, shape index: {}]
  %s12 = inlined_call_operand.vmem [shape: f32[2,1,32], index: 12, kind: input, shape index: {}]
  %s13 = inlined_call_operand.hbm [shape: f32[2,8,32], index: 13, kind: output, shape index: {}]
  %s14 = sld [smem:[#allocation0]]
  $region89: #{siglip_encoder.1} parent=0
    _
  %s16 = ssub.s32 1, %s14
  %s17 = scalar_select 0, %s16, %s14
  $region1: #{siglip_encoder.1} parent=0
    #allocation2 [shape = 'u8[8192]{0}', space=vmem, size = 0x2000, scoped, tag = 'output window, operand 0']
    #allocation3 [shape = 's32[2]{0}', space=sflag, size = 0x8, scoped, tag = 'scoped memory for siglip_encoder.1']
    %18 = vsyncpa [#allocation3], 0
    %s19 = scalar_lea.sflag [#allocation3], 1
    %20 = vsyncpa %s19, 0
    loop: start=0, step=1, limit=6
    $region2: #{siglip_encoder.1} parent=1 // loop_pre_header
      _
    $region3: #{siglip_encoder.1} parent=1 // loop_header
      %s22 = sphi 0, %s26
      %p23 = scmp.ge.s32.totalorder %s22, 6
      %s29 = sphi 0, %s41
      %s30 = sphi 0, %s37
      %s31 = sphi 0, %s29
      %s32 = sphi 0, %s30
      %s33 = sphi 0, %s31
      %s34 = sphi 0, %s32
      %s44 = sphi 0, %s46
      %s47 = sphi 0, %s44
      %s48 = sphi 0, %s47
      %s64 = sphi 0, %s48
      %s70 = sphi 0, %s72
      %s73 = sphi 0, %s70
      %s74 = sphi 0, %s73
      %s90 = sphi 0, %s74
      %s96 = sphi 0, %s98
      %s99 = sphi 0, %s96
      %s100 = sphi 0, %s99
      %s116 = sphi 0, %s100
      %s122 = sphi 0, %s124
      %s125 = sphi 0, %s122
      %s126 = sphi 0, %s125
      %s142 = sphi 0, %s126
      %s148 = sphi 0, %s150
      %s151 = sphi 0, %s148
      %s152 = sphi 0, %s151
      %s168 = sphi 0, %s152
      %s174 = sphi 0, %s176
      %s177 = sphi 0, %s174
      %s178 = sphi 0, %s177
      %s194 = sphi 0, %s178
      %s200 = sphi 0, %s202
      %s203 = sphi 0, %s200
      %s204 = sphi 0, %s203
      %s220 = sphi 0, %s204
      %s226 = sphi 0, %s228
      %s229 = sphi 0, %s226
      %s230 = sphi 0, %s229
      %s246 = sphi 0, %s230
      %s252 = sphi 0, %s254
      %s255 = sphi 0, %s252
      %s256 = sphi 0, %s255
      %s272 = sphi 0, %s256
      %s278 = sphi 0, %s280
      %s281 = sphi 0, %s278
      %s282 = sphi 0, %s281
      %s298 = sphi 0, %s282
      %s304 = sphi 0, %s306
      %s307 = sphi 0, %s304
      %s308 = sphi 0, %s307
      %s324 = sphi 0, %s308
      %s330 = sphi 0, %s332
      %s333 = sphi 0, %s330
      %s334 = sphi 0, %s333
      %s350 = sphi 0, %s334
      %s356 = sphi 0, %s358
      %s359 = sphi 0, %s356
      %s360 = sphi 0, %s359
      %s376 = sphi 0, %s360
      %s382 = sphi 0, %s384
      %s385 = sphi 0, %s382
      %s386 = sphi 0, %s385
      %s402 = sphi 0, %s386
    $region4: #{siglip_encoder.1} parent=1 // loop_header_branch
      %25 = sbr.rel (%p23) target = $region8
    $region5: #{siglip_encoder.1} parent=1 // loop_body
      %s27 = ssub.s32 %s22, 1
      %s28 = ssub.s32 %s22, 2
      %s35 = sadd.s32 1, %s30
      %p36 = scmp.ge.s32.totalorder %s35, 2
      %s37 = scalar_select %p36, 0, %s35
      %s38 = sadd.s32 1, %s29
      %s39 = scalar_select %p36, %s38, %s29
      %p40 = scmp.ge.s32.totalorder %s39, 2
      %s41 = scalar_select %p40, 0, %s39
      %s42 = ssub.s32 %s29, %s41
      %p43 = scmp.eq.s32.totalorder %s42, 0
      %s45 = sadd.s32 %s44, 1
      %s46 = scalar_select %p43, %s44, %s45
      %p49 = pneg %p43
      %p50 = scmp.eq.s32.totalorder %s22, 3
      %p51 = por %p49, %p50
      %p52 = scmp.ne.s32.totalorder %s44, %s47
      %p53 = scmp.eq.s32.totalorder %s22, 0
      %p54 = por %p52, %p53
      %p55 = scmp.ne.s32.totalorder %s44, %s47
      %p56 = scmp.eq.s32.totalorder %s27, 3
      %p57 = por %p55, %p56
      %p58 = scmp.ne.s32.totalorder %s47, %s48
      %p59 = scmp.eq.s32.totalorder %s27, 0
      %p60 = por %p58, %p59
      %p61 = scmp.ne.s32.totalorder %s47, %s48
      %p62 = scmp.eq.s32.totalorder %s28, 3
      %p63 = por %p61, %p62
      %p65 = scmp.ne.s32.totalorder %s48, %s64
      %p66 = scmp.eq.s32.totalorder %s28, 0
      %p67 = por %p65, %p66
      %s68 = ssub.s32 %s30, %s37
      %p69 = scmp.eq.s32.totalorder %s68, 0
      %s71 = sadd.s32 %s70, 1
      %s72 = scalar_select %p69, %s70, %s71
      %p75 = pneg %p69
      %p76 = scmp.eq.s32.totalorder %s22, 3
      %p77 = por %p75, %p76
      %p78 = scmp.ne.s32.totalorder %s70, %s73
      %p79 = scmp.eq.s32.totalorder %s22, 0
      %p80 = por %p78, %p79
      %p81 = scmp.ne.s32.totalorder %s70, %s73
      %p82 = scmp.eq.s32.totalorder %s27, 3
      %p83 = por %p81, %p82
      %p84 = scmp.ne.s32.totalorder %s73, %s74
      %p85 = scmp.eq.s32.totalorder %s27, 0
      %p86 = por %p84, %p85
      %p87 = scmp.ne.s32.totalorder %s73, %s74
      %p88 = scmp.eq.s32.totalorder %s28, 3
      %p89 = por %p87, %p88
      %p91 = scmp.ne.s32.totalorder %s74, %s90
      %p92 = scmp.eq.s32.totalorder %s28, 0
      %p93 = por %p91, %p92
      %s94 = ssub.s32 %s30, %s37
      %p95 = scmp.eq.s32.totalorder %s94, 0
      %s97 = sadd.s32 %s96, 1
      %s98 = scalar_select %p95, %s96, %s97
      %p101 = pneg %p95
      %p102 = scmp.eq.s32.totalorder %s22, 3
      %p103 = por %p101, %p102
      %p104 = scmp.ne.s32.totalorder %s96, %s99
      %p105 = scmp.eq.s32.totalorder %s22, 0
      %p106 = por %p104, %p105
      %p107 = scmp.ne.s32.totalorder %s96, %s99
      %p108 = scmp.eq.s32.totalorder %s27, 3
      %p109 = por %p107, %p108
      %p110 = scmp.ne.s32.totalorder %s99, %s100
      %p111 = scmp.eq.s32.totalorder %s27, 0
      %p112 = por %p110, %p111
      %p113 = scmp.ne.s32.totalorder %s99, %s100
      %p114 = scmp.eq.s32.totalorder %s28, 3
      %p115 = por %p113, %p114
      %p117 = scmp.ne.s32.totalorder %s100, %s116
      %p118 = scmp.eq.s32.totalorder %s28, 0
      %p119 = por %p117, %p118
      %s120 = ssub.s32 %s30, %s37
      %p121 = scmp.eq.s32.totalorder %s120, 0
      %s123 = sadd.s32 %s122, 1
      %s124 = scalar_select %p121, %s122, %s123
      %p127 = pneg %p121
      %p128 = scmp.eq.s32.totalorder %s22, 3
      %p129 = por %p127, %p128
      %p130 = scmp.ne.s32.totalorder %s122, %s125
      %p131 = scmp.eq.s32.totalorder %s22, 0
      %p132 = por %p130, %p131
      %p133 = scmp.ne.s32.totalorder %s122, %s125
      %p134 = scmp.eq.s32.totalorder %s27, 3
      %p135 = por %p133, %p134
      %p136 = scmp.ne.s32.totalorder %s125, %s126
      %p137 = scmp.eq.s32.totalorder %s27, 0
      %p138 = por %p136, %p137
      %p139 = scmp.ne.s32.totalorder %s125, %s126
      %p140 = scmp.eq.s32.totalorder %s28, 3
      %p141 = por %p139, %p140
      %p143 = scmp.ne.s32.totalorder %s126, %s142
      %p144 = scmp.eq.s32.totalorder %s28, 0
      %p145 = por %p143, %p144
      %s146 = ssub.s32 %s30, %s37
      %p147 = scmp.eq.s32.totalorder %s146, 0
      %s149 = sadd.s32 %s148, 1
      %s150 = scalar_select %p147, %s148, %s149
      %p153 = pneg %p147
      %p154 = scmp.eq.s32.totalorder %s22, 3
      %p155 = por %p153, %p154
      %p156 = scmp.ne.s32.totalorder %s148, %s151
      %p157 = scmp.eq.s32.totalorder %s22, 0
      %p158 = por %p156, %p157
      %p159 = scmp.ne.s32.totalorder %s148, %s151
      %p160 = scmp.eq.s32.totalorder %s27, 3
      %p161 = por %p159, %p160
      %p162 = scmp.ne.s32.totalorder %s151, %s152
      %p163 = scmp.eq.s32.totalorder %s27, 0
      %p164 = por %p162, %p163
      %p165 = scmp.ne.s32.totalorder %s151, %s152
      %p166 = scmp.eq.s32.totalorder %s28, 3
      %p167 = por %p165, %p166
      %p169 = scmp.ne.s32.totalorder %s152, %s168
      %p170 = scmp.eq.s32.totalorder %s28, 0
      %p171 = por %p169, %p170
      %s172 = ssub.s32 %s30, %s37
      %p173 = scmp.eq.s32.totalorder %s172, 0
      %s175 = sadd.s32 %s174, 1
      %s176 = scalar_select %p173, %s174, %s175
      %p179 = pneg %p173
      %p180 = scmp.eq.s32.totalorder %s22, 3
      %p181 = por %p179, %p180
      %p182 = scmp.ne.s32.totalorder %s174, %s177
      %p183 = scmp.eq.s32.totalorder %s22, 0
      %p184 = por %p182, %p183
      %p185 = scmp.ne.s32.totalorder %s174, %s177
      %p186 = scmp.eq.s32.totalorder %s27, 3
      %p187 = por %p185, %p186
      %p188 = scmp.ne.s32.totalorder %s177, %s178
      %p189 = scmp.eq.s32.totalorder %s27, 0
      %p190 = por %p188, %p189
      %p191 = scmp.ne.s32.totalorder %s177, %s178
      %p192 = scmp.eq.s32.totalorder %s28, 3
      %p193 = por %p191, %p192
      %p195 = scmp.ne.s32.totalorder %s178, %s194
      %p196 = scmp.eq.s32.totalorder %s28, 0
      %p197 = por %p195, %p196
      %s198 = ssub.s32 %s30, %s37
      %p199 = scmp.eq.s32.totalorder %s198, 0
      %s201 = sadd.s32 %s200, 1
      %s202 = scalar_select %p199, %s200, %s201
      %p205 = pneg %p199
      %p206 = scmp.eq.s32.totalorder %s22, 3
      %p207 = por %p205, %p206
      %p208 = scmp.ne.s32.totalorder %s200, %s203
      %p209 = scmp.eq.s32.totalorder %s22, 0
      %p210 = por %p208, %p209
      %p211 = scmp.ne.s32.totalorder %s200, %s203
      %p212 = scmp.eq.s32.totalorder %s27, 3
      %p213 = por %p211, %p212
      %p214 = scmp.ne.s32.totalorder %s203, %s204
      %p215 = scmp.eq.s32.totalorder %s27, 0
      %p216 = por %p214, %p215
      %p217 = scmp.ne.s32.totalorder %s203, %s204
      %p218 = scmp.eq.s32.totalorder %s28, 3
      %p219 = por %p217, %p218
      %p221 = scmp.ne.s32.totalorder %s204, %s220
      %p222 = scmp.eq.s32.totalorder %s28, 0
      %p223 = por %p221, %p222
      %s224 = ssub.s32 %s30, %s37
      %p225 = scmp.eq.s32.totalorder %s224, 0
      %s227 = sadd.s32 %s226, 1
      %s228 = scalar_select %p225, %s226, %s227
      %p231 = pneg %p225
      %p232 = scmp.eq.s32.totalorder %s22, 3
      %p233 = por %p231, %p232
      %p234 = scmp.ne.s32.totalorder %s226, %s229
      %p235 = scmp.eq.s32.totalorder %s22, 0
      %p236 = por %p234, %p235
      %p237 = scmp.ne.s32.totalorder %s226, %s229
      %p238 = scmp.eq.s32.totalorder %s27, 3
      %p239 = por %p237, %p238
      %p240 = scmp.ne.s32.totalorder %s229, %s230
      %p241 = scmp.eq.s32.totalorder %s27, 0
      %p242 = por %p240, %p241
      %p243 = scmp.ne.s32.totalorder %s229, %s230
      %p244 = scmp.eq.s32.totalorder %s28, 3
      %p245 = por %p243, %p244
      %p247 = scmp.ne.s32.totalorder %s230, %s246
      %p248 = scmp.eq.s32.totalorder %s28, 0
      %p249 = por %p247, %p248
      %s250 = ssub.s32 %s30, %s37
      %p251 = scmp.eq.s32.totalorder %s250, 0
      %s253 = sadd.s32 %s252, 1
      %s254 = scalar_select %p251, %s252, %s253
      %p257 = pneg %p251
      %p258 = scmp.eq.s32.totalorder %s22, 3
      %p259 = por %p257, %p258
      %p260 = scmp.ne.s32.totalorder %s252, %s255
      %p261 = scmp.eq.s32.totalorder %s22, 0
      %p262 = por %p260, %p261
      %p263 = scmp.ne.s32.totalorder %s252, %s255
      %p264 = scmp.eq.s32.totalorder %s27, 3
      %p265 = por %p263, %p264
      %p266 = scmp.ne.s32.totalorder %s255, %s256
      %p267 = scmp.eq.s32.totalorder %s27, 0
      %p268 = por %p266, %p267
      %p269 = scmp.ne.s32.totalorder %s255, %s256
      %p270 = scmp.eq.s32.totalorder %s28, 3
      %p271 = por %p269, %p270
      %p273 = scmp.ne.s32.totalorder %s256, %s272
      %p274 = scmp.eq.s32.totalorder %s28, 0
      %p275 = por %p273, %p274
      %s276 = ssub.s32 %s30, %s37
      %p277 = scmp.eq.s32.totalorder %s276, 0
      %s279 = sadd.s32 %s278, 1
      %s280 = scalar_select %p277, %s278, %s279
      %p283 = pneg %p277
      %p284 = scmp.eq.s32.totalorder %s22, 3
      %p285 = por %p283, %p284
      %p286 = scmp.ne.s32.totalorder %s278, %s281
      %p287 = scmp.eq.s32.totalorder %s22, 0
      %p288 = por %p286, %p287
      %p289 = scmp.ne.s32.totalorder %s278, %s281
      %p290 = scmp.eq.s32.totalorder %s27, 3
      %p291 = por %p289, %p290
      %p292 = scmp.ne.s32.totalorder %s281, %s282
      %p293 = scmp.eq.s32.totalorder %s27, 0
      %p294 = por %p292, %p293
      %p295 = scmp.ne.s32.totalorder %s281, %s282
      %p296 = scmp.eq.s32.totalorder %s28, 3
      %p297 = por %p295, %p296
      %p299 = scmp.ne.s32.totalorder %s282, %s298
      %p300 = scmp.eq.s32.totalorder %s28, 0
      %p301 = por %p299, %p300
      %s302 = ssub.s32 %s30, %s37
      %p303 = scmp.eq.s32.totalorder %s302, 0
      %s305 = sadd.s32 %s304, 1
      %s306 = scalar_select %p303, %s304, %s305
      %p309 = pneg %p303
      %p310 = scmp.eq.s32.totalorder %s22, 3
      %p311 = por %p309, %p310
      %p312 = scmp.ne.s32.totalorder %s304, %s307
      %p313 = scmp.eq.s32.totalorder %s22, 0
      %p314 = por %p312, %p313
      %p315 = scmp.ne.s32.totalorder %s304, %s307
      %p316 = scmp.eq.s32.totalorder %s27, 3
      %p317 = por %p315, %p316
      %p318 = scmp.ne.s32.totalorder %s307, %s308
      %p319 = scmp.eq.s32.totalorder %s27, 0
      %p320 = por %p318, %p319
      %p321 = scmp.ne.s32.totalorder %s307, %s308
      %p322 = scmp.eq.s32.totalorder %s28, 3
      %p323 = por %p321, %p322
      %p325 = scmp.ne.s32.totalorder %s308, %s324
      %p326 = scmp.eq.s32.totalorder %s28, 0
      %p327 = por %p325, %p326
      %s328 = ssub.s32 %s30, %s37
      %p329 = scmp.eq.s32.totalorder %s328, 0
      %s331 = sadd.s32 %s330, 1
      %s332 = scalar_select %p329, %s330, %s331
      %p335 = pneg %p329
      %p336 = scmp.eq.s32.totalorder %s22, 3
      %p337 = por %p335, %p336
      %p338 = scmp.ne.s32.totalorder %s330, %s333
      %p339 = scmp.eq.s32.totalorder %s22, 0
      %p340 = por %p338, %p339
      %p341 = scmp.ne.s32.totalorder %s330, %s333
      %p342 = scmp.eq.s32.totalorder %s27, 3
      %p343 = por %p341, %p342
      %p344 = scmp.ne.s32.totalorder %s333, %s334
      %p345 = scmp.eq.s32.totalorder %s27, 0
      %p346 = por %p344, %p345
      %p347 = scmp.ne.s32.totalorder %s333, %s334
      %p348 = scmp.eq.s32.totalorder %s28, 3
      %p349 = por %p347, %p348
      %p351 = scmp.ne.s32.totalorder %s334, %s350
      %p352 = scmp.eq.s32.totalorder %s28, 0
      %p353 = por %p351, %p352
      %s354 = ssub.s32 %s30, %s37
      %p355 = scmp.eq.s32.totalorder %s354, 0
      %s357 = sadd.s32 %s356, 1
      %s358 = scalar_select %p355, %s356, %s357
      %p361 = pneg %p355
      %p362 = scmp.eq.s32.totalorder %s22, 3
      %p363 = por %p361, %p362
      %p364 = scmp.ne.s32.totalorder %s356, %s359
      %p365 = scmp.eq.s32.totalorder %s22, 0
      %p366 = por %p364, %p365
      %p367 = scmp.ne.s32.totalorder %s356, %s359
      %p368 = scmp.eq.s32.totalorder %s27, 3
      %p369 = por %p367, %p368
      %p370 = scmp.ne.s32.totalorder %s359, %s360
      %p371 = scmp.eq.s32.totalorder %s27, 0
      %p372 = por %p370, %p371
      %p373 = scmp.ne.s32.totalorder %s359, %s360
      %p374 = scmp.eq.s32.totalorder %s28, 3
      %p375 = por %p373, %p374
      %p377 = scmp.ne.s32.totalorder %s360, %s376
      %p378 = scmp.eq.s32.totalorder %s28, 0
      %p379 = por %p377, %p378
      %s380 = ssub.s32 %s29, %s41
      %p381 = scmp.eq.s32.totalorder %s380, 0
      %s383 = sadd.s32 %s382, 1
      %s384 = scalar_select %p381, %s382, %s383
      %p387 = pneg %p381
      %p388 = scmp.eq.s32.totalorder %s22, 3
      %p389 = por %p387, %p388
      %p390 = scmp.ne.s32.totalorder %s382, %s385
      %p391 = scmp.eq.s32.totalorder %s22, 0
      %p392 = por %p390, %p391
      %p393 = scmp.ne.s32.totalorder %s382, %s385
      %p394 = scmp.eq.s32.totalorder %s27, 3
      %p395 = por %p393, %p394
      %p396 = scmp.ne.s32.totalorder %s385, %s386
      %p397 = scmp.eq.s32.totalorder %s27, 0
      %p398 = por %p396, %p397
      %p399 = scmp.ne.s32.totalorder %s385, %s386
      %p400 = scmp.eq.s32.totalorder %s28, 3
      %p401 = por %p399, %p400
      %p403 = scmp.ne.s32.totalorder %s386, %s402
      %p404 = scmp.eq.s32.totalorder %s28, 0
      %p405 = por %p403, %p404
      %p406 = scmp.le.s32.totalorder 1, %s22
      %p407 = scmp.lt.s32.totalorder %s22, 5
      %p408 = pnand %p406, %p407
      %p409 = pneg %p408
      // Predicated region
      $region9: #{siglip_encoder.1} parent=5 // pred_check
        _
      $region10: #{siglip_encoder.1} parent=5 // pred_check_branch
        %411 = sbr.rel (%p408) target = $region12
      $region11: #{siglip_encoder.1} parent=5 // pred_region
        %s412 = ssub.s32 %s22, 1
      $region12: #{siglip_encoder.1} parent=5 // pred_fallthru
        _
      %p413 = scmp.lt.s32.totalorder %s22, 4
      // Predicated region
      $region13: #{siglip_encoder.1} parent=5 // pred_check
        %p414 = pneg %p413
      $region14: #{siglip_encoder.1} parent=5 // pred_check_branch
        %416 = sbr.rel (%p414) target = $region16
      $region15: #{siglip_encoder.1} parent=5 // pred_region
        // Predicated region
        $region17: #{siglip_encoder.1} parent=15 // pred_check
          %p417 = pneg %p54
        $region18: #{siglip_encoder.1} parent=15 // pred_check_branch
          %419 = sbr.rel (%p417) target = $region20
        $region19: #{siglip_encoder.1} parent=15 // pred_region
          %p420 = scmp.lt.s32.totalorder %s29, 1
          %s421 = scalar_select %p420, %s29, 1
          %s422 = smul.addr %s421, 8
          %s423 = scalar_lea.vmem %s0, %s422
        $region20: #{siglip_encoder.1} parent=15 // pred_fallthru
          _
        // Predicated region
        $region21: #{siglip_encoder.1} parent=15 // pred_check
          %p424 = pneg %p80
        $region22: #{siglip_encoder.1} parent=15 // pred_check_branch
          %426 = sbr.rel (%p424) target = $region24
        $region23: #{siglip_encoder.1} parent=15 // pred_region
          %p427 = scmp.lt.s32.totalorder %s30, 1
          %s428 = scalar_select %p427, %s30, 1
          %s429 = scalar_lea.vmem %s1, %s428
        $region24: #{siglip_encoder.1} parent=15 // pred_fallthru
          _
        // Predicated region
        $region25: #{siglip_encoder.1} parent=15 // pred_check
          %p430 = pneg %p106
        $region26: #{siglip_encoder.1} parent=15 // pred_check_branch
          %432 = sbr.rel (%p430) target = $region28
        $region27: #{siglip_encoder.1} parent=15 // pred_region
          %p433 = scmp.lt.s32.totalorder %s30, 1
          %s434 = scalar_select %p433, %s30, 1
          %s435 = scalar_lea.vmem %s2, %s434
        $region28: #{siglip_encoder.1} parent=15 // pred_fallthru
          _
        // Predicated region
        $region29: #{siglip_encoder.1} parent=15 // pred_check
          %p436 = pneg %p132
        $region30: #{siglip_encoder.1} parent=15 // pred_check_branch
          %438 = sbr.rel (%p436) target = $region32
        $region31: #{siglip_encoder.1} parent=15 // pred_region
          %p439 = scmp.lt.s32.totalorder %s30, 1
          %s440 = scalar_select %p439, %s30, 1
          %s441 = smul.addr %s440, 4
          %s442 = smul.addr %s441, 8
          %s443 = scalar_lea.vmem %s3, %s442
        $region32: #{siglip_encoder.1} parent=15 // pred_fallthru
          _
        // Predicated region
        $region33: #{siglip_encoder.1} parent=15 // pred_check
          %p444 = pneg %p158
        $region34: #{siglip_encoder.1} parent=15 // pred_check_branch
          %446 = sbr.rel (%p444) target = $region36
        $region35: #{siglip_encoder.1} parent=15 // pred_region
          %p447 = scmp.lt.s32.totalorder %s30, 1
          %s448 = scalar_select %p447, %s30, 1
          %s449 = scalar_lea.vmem %s4, %s448
        $region36: #{siglip_encoder.1} parent=15 // pred_fallthru
          _
        // Predicated region
        $region37: #{siglip_encoder.1} parent=15 // pred_check
          %p450 = pneg %p184
        $region38: #{siglip_encoder.1} parent=15 // pred_check_branch
          %452 = sbr.rel (%p450) target = $region40
        $region39: #{siglip_encoder.1} parent=15 // pred_region
          %p453 = scmp.lt.s32.totalorder %s30, 1
          %s454 = scalar_select %p453, %s30, 1
          %s455 = smul.addr %s454, 4
          %s456 = smul.addr %s455, 8
          %s457 = scalar_lea.vmem %s5, %s456
        $region40: #{siglip_encoder.1} parent=15 // pred_fallthru
          _
        // Predicated region
        $region41: #{siglip_encoder.1} parent=15 // pred_check
          %p458 = pneg %p210
        $region42: #{siglip_encoder.1} parent=15 // pred_check_branch
          %460 = sbr.rel (%p458) target = $region44
        $region43: #{siglip_encoder.1} parent=15 // pred_region
          %p461 = scmp.lt.s32.totalorder %s30, 1
          %s462 = scalar_select %p461, %s30, 1
          %s463 = scalar_lea.vmem %s6, %s462
        $region44: #{siglip_encoder.1} parent=15 // pred_fallthru
          _
        // Predicated region
        $region45: #{siglip_encoder.1} parent=15 // pred_check
          %p464 = pneg %p236
        $region46: #{siglip_encoder.1} parent=15 // pred_check_branch
          %466 = sbr.rel (%p464) target = $region48
        $region47: #{siglip_encoder.1} parent=15 // pred_region
          %p467 = scmp.lt.s32.totalorder %s30, 1
          %s468 = scalar_select %p467, %s30, 1
          %s469 = scalar_lea.vmem %s7, %s468
        $region48: #{siglip_encoder.1} parent=15 // pred_fallthru
          _
        // Predicated region
        $region49: #{siglip_encoder.1} parent=15 // pred_check
          %p470 = pneg %p262
        $region50: #{siglip_encoder.1} parent=15 // pred_check_branch
          %472 = sbr.rel (%p470) target = $region52
        $region51: #{siglip_encoder.1} parent=15 // pred_region
          %p473 = scmp.lt.s32.totalorder %s30, 1
          %s474 = scalar_select %p473, %s30, 1
          %s475 = scalar_lea.vmem %s8, %s474
        $region52: #{siglip_encoder.1} parent=15 // pred_fallthru
          _
        // Predicated region
        $region53: #{siglip_encoder.1} parent=15 // pred_check
          %p476 = pneg %p288
        $region54: #{siglip_encoder.1} parent=15 // pred_check_branch
          %478 = sbr.rel (%p476) target = $region56
        $region55: #{siglip_encoder.1} parent=15 // pred_region
          %p479 = scmp.lt.s32.totalorder %s30, 1
          %s480 = scalar_select %p479, %s30, 1
          %s481 = smul.addr %s480, 4
          %s482 = smul.addr %s481, 8
          %s483 = scalar_lea.vmem %s9, %s482
        $region56: #{siglip_encoder.1} parent=15 // pred_fallthru
          _
        // Predicated region
        $region57: #{siglip_encoder.1} parent=15 // pred_check
          %p484 = pneg %p314
        $region58: #{siglip_encoder.1} parent=15 // pred_check_branch
          %486 = sbr.rel (%p484) target = $region60
        $region59: #{siglip_encoder.1} parent=15 // pred_region
          %p487 = scmp.lt.s32.totalorder %s30, 1
          %s488 = scalar_select %p487, %s30, 1
          %s489 = scalar_lea.vmem %s10, %s488
        $region60: #{siglip_encoder.1} parent=15 // pred_fallthru
          _
        // Predicated region
        $region61: #{siglip_encoder.1} parent=15 // pred_check
          %p490 = pneg %p340
        $region62: #{siglip_encoder.1} parent=15 // pred_check_branch
          %492 = sbr.rel (%p490) target = $region64
        $region63: #{siglip_encoder.1} parent=15 // pred_region
          %p493 = scmp.lt.s32.totalorder %s30, 1
          %s494 = scalar_select %p493, %s30, 1
          %s495 = smul.addr %s494, 8
          %s496 = smul.addr %s495, 8
          %s497 = scalar_lea.vmem %s11, %s496
        $region64: #{siglip_encoder.1} parent=15 // pred_fallthru
          _
        // Predicated region
        $region65: #{siglip_encoder.1} parent=15 // pred_check
          %p498 = pneg %p366
        $region66: #{siglip_encoder.1} parent=15 // pred_check_branch
          %500 = sbr.rel (%p498) target = $region68
        $region67: #{siglip_encoder.1} parent=15 // pred_region
          %p501 = scmp.lt.s32.totalorder %s30, 1
          %s502 = scalar_select %p501, %s30, 1
          %s503 = scalar_lea.vmem %s12, %s502
        $region68: #{siglip_encoder.1} parent=15 // pred_fallthru
          _
      $region16: #{siglip_encoder.1} parent=5 // pred_fallthru
        _
      %p504 = scmp.le.s32.totalorder 1, %s22
      %p505 = scmp.lt.s32.totalorder %s22, 5
      %p506 = pnand %p504, %p505
      %p507 = pneg %p506
      // Predicated region
      $region69: #{siglip_encoder.1} parent=5 // pred_check
        _
      $region70: #{siglip_encoder.1} parent=5 // pred_check_branch
        %509 = sbr.rel (%p506) target = $region72
      $region71: #{siglip_encoder.1} parent=5 // pred_region
        %s510 = ssub.s32 %s22, 1
        %p511 = scmp.lt.s32.totalorder %s31, 1
        %s512 = scalar_select %p511, %s31, 1
        %s513 = smul.addr %s512, 8
        %s514 = scalar_lea.vmem %s0, %s513
        %p515 = pneg %p60
        %p516 = pneg %p57
        %p517 = scmp.lt.s32.totalorder %s32, 1
        %s518 = scalar_select %p517, %s32, 1
        %s519 = scalar_lea.vmem %s1, %s518
        %p520 = pneg %p86
        %p521 = pneg %p83
        %p522 = scmp.lt.s32.totalorder %s32, 1
        %s523 = scalar_select %p522, %s32, 1
        %s524 = scalar_lea.vmem %s2, %s523
        %p525 = pneg %p112
        %p526 = pneg %p109
        %p527 = scmp.lt.s32.totalorder %s32, 1
        %s528 = scalar_select %p527, %s32, 1
        %s529 = smul.addr %s528, 4
        %s530 = smul.addr %s529, 8
        %s531 = scalar_lea.vmem %s3, %s530
        %p532 = pneg %p138
        %p533 = pneg %p135
        %p534 = scmp.lt.s32.totalorder %s32, 1
        %s535 = scalar_select %p534, %s32, 1
        %s536 = scalar_lea.vmem %s4, %s535
        %p537 = pneg %p164
        %p538 = pneg %p161
        %p539 = scmp.lt.s32.totalorder %s32, 1
        %s540 = scalar_select %p539, %s32, 1
        %s541 = smul.addr %s540, 4
        %s542 = smul.addr %s541, 8
        %s543 = scalar_lea.vmem %s5, %s542
        %p544 = pneg %p190
        %p545 = pneg %p187
        %p546 = scmp.lt.s32.totalorder %s32, 1
        %s547 = scalar_select %p546, %s32, 1
        %s548 = scalar_lea.vmem %s6, %s547
        %p549 = pneg %p216
        %p550 = pneg %p213
        %p551 = scmp.lt.s32.totalorder %s32, 1
        %s552 = scalar_select %p551, %s32, 1
        %s553 = scalar_lea.vmem %s7, %s552
        %p554 = pneg %p242
        %p555 = pneg %p239
        %p556 = scmp.lt.s32.totalorder %s32, 1
        %s557 = scalar_select %p556, %s32, 1
        %s558 = scalar_lea.vmem %s8, %s557
        %p559 = pneg %p268
        %p560 = pneg %p265
        %p561 = scmp.lt.s32.totalorder %s32, 1
        %s562 = scalar_select %p561, %s32, 1
        %s563 = smul.addr %s562, 4
        %s564 = smul.addr %s563, 8
        %s565 = scalar_lea.vmem %s9, %s564
        %p566 = pneg %p294
        %p567 = pneg %p291
        %p568 = scmp.lt.s32.totalorder %s32, 1
        %s569 = scalar_select %p568, %s32, 1
        %s570 = scalar_lea.vmem %s10, %s569
        %p571 = pneg %p320
        %p572 = pneg %p317
        %p573 = scmp.lt.s32.totalorder %s32, 1
        %s574 = scalar_select %p573, %s32, 1
        %s575 = smul.addr %s574, 8
        %s576 = smul.addr %s575, 8
        %s577 = scalar_lea.vmem %s11, %s576
        %p578 = pneg %p346
        %p579 = pneg %p343
        %p580 = scmp.lt.s32.totalorder %s32, 1
        %s581 = scalar_select %p580, %s32, 1
        %s582 = scalar_lea.vmem %s12, %s581
        %p583 = pneg %p372
        %p584 = pneg %p369
        %p585 = pneg %p398
        %p586 = pneg %p395
        %s587 = sand.u32 %s385, 1
        %s588 = scalar_lea.sflag [#allocation3], %s587
        %s589 = sand.u32 %s385, 1
        %s590 = smul.addr %s589, 8
        %s591 = scalar_lea.vmem [#allocation2], %s590
        %p592 = scmp.lt.s32.totalorder %s31, 1
        %s593 = scalar_select %p592, %s31, 1
        %s594 = smul.addr %s593, 8
        %s595 = scalar_lea.vmem %s0, %s594
        %p596 = scmp.lt.s32.totalorder %s32, 1
        %s597 = scalar_select %p596, %s32, 1
        %s598 = scalar_lea.vmem %s1, %s597
        %p599 = scmp.lt.s32.totalorder %s32, 1
        %s600 = scalar_select %p599, %s32, 1
        %s601 = scalar_lea.vmem %s2, %s600
        %p602 = scmp.lt.s32.totalorder %s32, 1
        %s603 = scalar_select %p602, %s32, 1
        %s604 = smul.addr %s603, 4
        %s605 = smul.addr %s604, 8
        %s606 = scalar_lea.vmem %s3, %s605
        %p607 = scmp.lt.s32.totalorder %s32, 1
        %s608 = scalar_select %p607, %s32, 1
        %s609 = scalar_lea.vmem %s4, %s608
        %p610 = scmp.lt.s32.totalorder %s32, 1
        %s611 = scalar_select %p610, %s32, 1
        %s612 = smul.addr %s611, 4
        %s613 = smul.addr %s612, 8
        %s614 = scalar_lea.vmem %s5, %s613
        %p615 = scmp.lt.s32.totalorder %s32, 1
        %s616 = scalar_select %p615, %s32, 1
        %s617 = scalar_lea.vmem %s6, %s616
        %p618 = scmp.lt.s32.totalorder %s32, 1
        %s619 = scalar_select %p618, %s32, 1
        %s620 = scalar_lea.vmem %s7, %s619
        %p621 = scmp.lt.s32.totalorder %s32, 1
        %s622 = scalar_select %p621, %s32, 1
        %s623 = scalar_lea.vmem %s8, %s622
        %p624 = scmp.lt.s32.totalorder %s32, 1
        %s625 = scalar_select %p624, %s32, 1
        %s626 = smul.addr %s625, 4
        %s627 = smul.addr %s626, 8
        %s628 = scalar_lea.vmem %s9, %s627
        %p629 = scmp.lt.s32.totalorder %s32, 1
        %s630 = scalar_select %p629, %s32, 1
        %s631 = scalar_lea.vmem %s10, %s630
        %p632 = scmp.lt.s32.totalorder %s32, 1
        %s633 = scalar_select %p632, %s32, 1
        %s634 = smul.addr %s633, 8
        %s635 = smul.addr %s634, 8
        %s636 = scalar_lea.vmem %s11, %s635
        %p637 = scmp.lt.s32.totalorder %s32, 1
        %s638 = scalar_select %p637, %s32, 1
        %s639 = scalar_lea.vmem %s12, %s638
        %p640 = scmp.eq.s32.totalorder %s32, 0
        // Predicated region
        $region73: #{siglip_encoder.1} parent=71 // pred_check
          %p641 = pneg %p640
        $region74: #{siglip_encoder.1} parent=71 // pred_check_branch
          %643 = sbr.rel (%p641) target = $region76
        $region75: #{siglip_encoder.1} parent=71 // pred_region
          %v644 = vld [vmem:[%s595] sm:$0xff]
          %vm645 = vcmask 261120
          %646 = vst.msk [vmem:[%s591] sm:$0xff] %vm645, %v644
        $region76: #{siglip_encoder.1} parent=71 // pred_fallthru
          _
        %v647 = vld [vmem:[%s591] sm:$0xff]
        %v648 = vld [vmem:[%s598] sm:$0x1]
        %v649 = vld [vmem:[%s601] sm:$0x1]
        %vm650 = vcmask 261120
        %v651 = vsel %vm650, %v647, 0.0
        %652 = vadd.xlane.f32.xlu0 %v651
        %v653 = vpop.xlane.xlu0 %652
        %v654 = vrcp.pop 32.0
        %v655 = vmul.f32 %v653, %v654
        %v656 = vsub.f32 %v647, %v655
        %v657 = vmul.f32 %v656, %v656
        %v658 = vsel %vm650, %v657, 0.0
        %659 = vadd.xlane.f32.xlu0 %v658
        %v660 = vpop.xlane.xlu0 %659
        %v661 = vmul.f32 %v660, %v654
        %v662 = vadd.f32 %v661, 1e-06
        %v663 = vrsqrt.pop %v662
        %v664 = vmul.f32 %v656, %v663
        %v666 = vlaneseq
        %v667 = vshrl.u32 %v666, 7
        %v668 = vsub.s32 0, %v667
        %v669 = vrot.slane %v648, %v668
        %v671 = vmul.f32 %v664, %v669
        %v673 = vlaneseq
        %v674 = vshrl.u32 %v673, 7
        %v675 = vsub.s32 0, %v674
        %v676 = vrot.slane %v649, %v675
        %v678 = vadd.f32 %v671, %v676
        %v679 = vld [vmem:[%s606] sm:$0xff]
        %v680 = vld [vmem:[%s606 + $0x8] sm:$0xff]
        %v681 = vld [vmem:[%s606 + $0x10] sm:$0xff]
        %v682 = vld [vmem:[%s606 + $0x18] sm:$0xff]
        %v683 = vld [vmem:[%s609] sm:$0x1]
        %v685 = vlaneseq
        %v686 = vshrl.u32 %v685, 7
        %v687 = vsub.s32 0, %v686
        %v688 = vrot.slane %v683, %v687
        %v691 = vsel %vm650, %v678, 0
        %693 = vmatprep.subr.mxu0 0.0
        %694 = vmatpush1.msra.mxu0 %v679
        %695 = vmatprep.subr.mxu0 0.0
        %696 = vmatpush1.msra.mxu0 %v680
        %697 = vmatprep.subr.mxu0 0.0
        %698 = vmatpush1.msra.mxu0 %v681
        %699 = vmatprep.subr.mxu0 0.0
        %700 = vmatpush1.msra.mxu0 %v682
        %701 = vmatprep.subr.mxu0 0.0
        %702 = vmatpush1.msra.mxu0 0.0
        %703 = vmatprep.subr.mxu0 0.0
        %704 = vmatpush1.msra.mxu0 0.0
        %705 = vmatprep.subr.mxu0 0.0
        %706 = vmatpush1.msra.mxu0 0.0
        %707 = vmatprep.subr.mxu0 0.0
        %708 = vmatpush1.msra.mxu0 0.0
        %709 = vmatprep.subr.mxu0 0.0
        %710 = vmatpush1.msra.mxu0 0.0
        %711 = vmatprep.subr.mxu0 0.0
        %712 = vmatpush1.msra.mxu0 0.0
        %713 = vmatprep.subr.mxu0 0.0
        %714 = vmatpush1.msra.mxu0 0.0
        %715 = vmatprep.subr.mxu0 0.0
        %716 = vmatpush1.msra.mxu0 0.0
        %717 = vmatprep.subr.mxu0 0.0
        %718 = vmatpush1.msra.mxu0 0.0
        %719 = vmatprep.subr.mxu0 0.0
        %720 = vmatpush1.msra.mxu0 0.0
        %721 = vmatprep.subr.mxu0 0.0
        %722 = vmatpush1.msra.mxu0 0.0
        %723 = vmatprep.subr.mxu0 0.0
        %724 = vmatpush1.msra.mxu0 0.0
        %725 = vmatprep.subr.mxu0 0.0
        %726 = vmatpush1.msra.mxu0 0.0
        %727 = vmatprep.subr.mxu0 0.0
        %728 = vmatpush1.msra.mxu0 0.0
        %729 = vmatprep.subr.mxu0 0.0
        %730 = vmatpush1.msra.mxu0 0.0
        %731 = vmatprep.subr.mxu0 0.0
        %732 = vmatpush1.msra.mxu0 0.0
        %733 = vmatprep.subr.mxu0 0.0
        %734 = vmatpush1.msra.mxu0 0.0
        %735 = vmatprep.subr.mxu0 0.0
        %736 = vmatpush1.msra.mxu0 0.0
        %737 = vmatprep.subr.mxu0 0.0
        %738 = vmatpush1.msra.mxu0 0.0
        %739 = vmatprep.subr.mxu0 0.0
        %740 = vmatpush1.msra.mxu0 0.0
        %741 = vmatprep.subr.mxu0 0.0
        %742 = vmatpush1.msra.mxu0 0.0
        %743 = vmatprep.subr.mxu0 0.0
        %744 = vmatpush1.msra.mxu0 0.0
        %745 = vmatprep.subr.mxu0 0.0
        %746 = vmatpush1.msra.mxu0 0.0
        %747 = vmatprep.subr.mxu0 0.0
        %748 = vmatpush1.msra.mxu0 0.0
        %749 = vmatprep.subr.mxu0 0.0
        %750 = vmatpush1.msra.mxu0 0.0
        %751 = vmatprep.subr.mxu0 0.0
        %752 = vmatpush1.msra.mxu0 0.0
        %753 = vmatprep.subr.mxu0 0.0
        %754 = vmatpush1.msra.mxu0 0.0
        %755 = vmatprep.subr.mxu0 0.0
        %756 = vmatpush1.msra.mxu0 0.0
        %757 = vmatprep.mubr.f32.mxu0 0.0
        %758 = vmatmul.mubr.f32.gmra.mrb[0].mxu0 %v691
        %v759 = vpop.f32.mrb[0].mxu0
        %v760 = vadd.f32 %v688, %v759
        %v761 = vpop.f32.mrb[0].mxu0
        %762 = vdwg.mxu0
        %764 = vrot.lane.b32.xlu0 %v760, 96
        %v765 = vpop.permute.xlu0 %764
        %vm766 = vcmask 64512
        %v767 = vsel %vm766, %v760, 0
        %v769 = vsel %vm766, %v765, 0
        %771 = vmatprep.subr.mxu0 0.0
        %772 = vmatpush1.xpose.msra.mxu0 %v769
        %773 = vmatprep.subr.mxu0 0.0
        %774 = vmatpush1.xpose.msra.mxu0 0.0
        %775 = vmatprep.subr.mxu0 0.0
        %776 = vmatpush1.xpose.msra.mxu0 0.0
        %777 = vmatprep.subr.mxu0 0.0
        %778 = vmatpush1.xpose.msra.mxu0 0.0
        %779 = vmatprep.subr.mxu0 0.0
        %780 = vmatpush1.xpose.msra.mxu0 0.0
        %781 = vmatprep.subr.mxu0 0.0
        %782 = vmatpush1.xpose.msra.mxu0 0.0
        %783 = vmatprep.subr.mxu0 0.0
        %784 = vmatpush1.xpose.msra.mxu0 0.0
        %785 = vmatprep.subr.mxu0 0.0
        %786 = vmatpush1.xpose.msra.mxu0 0.0
        %787 = vmatprep.subr.mxu0 0.0
        %788 = vmatpush1.xpose.msra.mxu0 0.0
        %789 = vmatprep.subr.mxu0 0.0
        %790 = vmatpush1.xpose.msra.mxu0 0.0
        %791 = vmatprep.subr.mxu0 0.0
        %792 = vmatpush1.xpose.msra.mxu0 0.0
        %793 = vmatprep.subr.mxu0 0.0
        %794 = vmatpush1.xpose.msra.mxu0 0.0
        %795 = vmatprep.subr.mxu0 0.0
        %796 = vmatpush1.xpose.msra.mxu0 0.0
        %797 = vmatprep.subr.mxu0 0.0
        %798 = vmatpush1.xpose.msra.mxu0 0.0
        %799 = vmatprep.subr.mxu0 0.0
        %800 = vmatpush1.xpose.msra.mxu0 0.0
        %801 = vmatprep.subr.mxu0 0.0
        %802 = vmatpush1.xpose.msra.mxu0 0.0
        %803 = vmatprep.subr.mxu0 0.0
        %804 = vmatpush1.xpose.msra.mxu0 0.0
        %805 = vmatprep.subr.mxu0 0.0
        %806 = vmatpush1.xpose.msra.mxu0 0.0
        %807 = vmatprep.subr.mxu0 0.0
        %808 = vmatpush1.xpose.msra.mxu0 0.0
        %809 = vmatprep.subr.mxu0 0.0
        %810 = vmatpush1.xpose.msra.mxu0 0.0
        %811 = vmatprep.subr.mxu0 0.0
        %812 = vmatpush1.xpose.msra.mxu0 0.0
        %813 = vmatprep.subr.mxu0 0.0
        %814 = vmatpush1.xpose.msra.mxu0 0.0
        %815 = vmatprep.subr.mxu0 0.0
        %816 = vmatpush1.xpose.msra.mxu0 0.0
        %817 = vmatprep.subr.mxu0 0.0
        %818 = vmatpush1.xpose.msra.mxu0 0.0
        %819 = vmatprep.subr.mxu0 0.0
        %820 = vmatpush1.xpose.msra.mxu0 0.0
        %821 = vmatprep.subr.mxu0 0.0
        %822 = vmatpush1.xpose.msra.mxu0 0.0
        %823 = vmatprep.subr.mxu0 0.0
        %824 = vmatpush1.xpose.msra.mxu0 0.0
        %825 = vmatprep.subr.mxu0 0.0
        %826 = vmatpush1.xpose.msra.mxu0 0.0
        %827 = vmatprep.subr.mxu0 0.0
        %828 = vmatpush1.xpose.msra.mxu0 0.0
        %829 = vmatprep.subr.mxu0 0.0
        %830 = vmatpush1.xpose.msra.mxu0 0.0
        %831 = vmatprep.subr.mxu0 0.0
        %832 = vmatpush1.xpose.msra.mxu0 0.0
        %833 = vmatprep.subr.mxu0 0.0
        %834 = vmatpush1.xpose.msra.mxu0 0.0
        %835 = vmatprep.mubr.f32.mxu0 0.0
        %836 = vmatmul.mubr.f32.gmra.mrb[0].mxu0 %v767
        %v837 = vpop.f32.mrb[0].mxu0
        %v838 = vadd.f32 0.0, %v837
        %v839 = vpop.f32.mrb[0].mxu0
        %840 = vdwg.mxu0
        %v841 = vsel %vm766, %v838, -inf
        %842 = vmax.xlane.f32.xlu0 %v841
        %v843 = vpop.xlane.xlu0 %842
        %v844 = vsub.f32 %v838, %v843
        %v845 = vmul.f32 %v844, 1.442695
        %v846 = vpow.pop %v845
        %v847 = vsel %vm766, %v846, 0.0
        %848 = vadd.xlane.f32.xlu0 %v847
        %v849 = vpop.xlane.xlu0 %848
        %v850 = vrcp.pop %v849
        %v851 = vmul.f32 %v846, %v850
        %852 = vrot.lane.b32.xlu0 %v760, 64
        %v853 = vpop.permute.xlu0 %852
        %v856 = vsel %vm766, %v851, 0
        %858 = vmatprep.subr.mxu0 0.0
        %859 = vmatpush1.msra.mxu0 %v853
        %860 = vmatprep.subr.mxu0 0.0
        %861 = vmatpush1.msra.mxu0 0.0
        %862 = vmatprep.subr.mxu0 0.0
        %863 = vmatpush1.msra.mxu0 0.0
        %864 = vmatprep.subr.mxu0 0.0
        %865 = vmatpush1.msra.mxu0 0.0
        %866 = vmatprep.subr.mxu0 0.0
        %867 = vmatpush1.msra.mxu0 0.0
        %868 = vmatprep.subr.mxu0 0.0
        %869 = vmatpush1.msra.mxu0 0.0
        %870 = vmatprep.subr.mxu0 0.0
        %871 = vmatpush1.msra.mxu0 0.0
        %872 = vmatprep.subr.mxu0 0.0
        %873 = vmatpush1.msra.mxu0 0.0
        %874 = vmatprep.subr.mxu0 0.0
        %875 = vmatpush1.msra.mxu0 0.0
        %876 = vmatprep.subr.mxu0 0.0
        %877 = vmatpush1.msra.mxu0 0.0
        %878 = vmatprep.subr.mxu0 0.0
        %879 = vmatpush1.msra.mxu0 0.0
        %880 = vmatprep.subr.mxu0 0.0
        %881 = vmatpush1.msra.mxu0 0.0
        %882 = vmatprep.subr.mxu0 0.0
        %883 = vmatpush1.msra.mxu0 0.0
        %884 = vmatprep.subr.mxu0 0.0
        %885 = vmatpush1.msra.mxu0 0.0
        %886 = vmatprep.subr.mxu0 0.0
        %887 = vmatpush1.msra.mxu0 0.0
        %888 = vmatprep.subr.mxu0 0.0
        %889 = vmatpush1.msra.mxu0 0.0
        %890 = vmatprep.subr.mxu0 0.0
        %891 = vmatpush1.msra.mxu0 0.0
        %892 = vmatprep.subr.mxu0 0.0
        %893 = vmatpush1.msra.mxu0 0.0
        %894 = vmatprep.subr.mxu0 0.0
        %895 = vmatpush1.msra.mxu0 0.0
        %896 = vmatprep.subr.mxu0 0.0
        %897 = vmatpush1.msra.mxu0 0.0
        %898 = vmatprep.subr.mxu0 0.0
        %899 = vmatpush1.msra.mxu0 0.0
        %900 = vmatprep.subr.mxu0 0.0
        %901 = vmatpush1.msra.mxu0 0.0
        %902 = vmatprep.subr.mxu0 0.0
        %903 = vmatpush1.msra.mxu0 0.0
        %904 = vmatprep.subr.mxu0 0.0
        %905 = vmatpush1.msra.mxu0 0.0
        %906 = vmatprep.subr.mxu0 0.0
        %907 = vmatpush1.msra.mxu0 0.0
        %908 = vmatprep.subr.mxu0 0.0
        %909 = vmatpush1.msra.mxu0 0.0
        %910 = vmatprep.subr.mxu0 0.0
        %911 = vmatpush1.msra.mxu0 0.0
        %912 = vmatprep.subr.mxu0 0.0
        %913 = vmatpush1.msra.mxu0 0.0
        %914 = vmatprep.subr.mxu0 0.0
        %915 = vmatpush1.msra.mxu0 0.0
        %916 = vmatprep.subr.mxu0 0.0
        %917 = vmatpush1.msra.mxu0 0.0
        %918 = vmatprep.subr.mxu0 0.0
        %919 = vmatpush1.msra.mxu0 0.0
        %920 = vmatprep.subr.mxu0 0.0
        %921 = vmatpush1.msra.mxu0 0.0
        %922 = vmatprep.mubr.f32.mxu0 0.0
        %923 = vmatmul.mubr.f32.gmra.mrb[0].mxu0 %v856
        %v924 = vpop.f32.mrb[0].mxu0
        %v925 = vadd.f32 0.0, %v924
        %v926 = vpop.f32.mrb[0].mxu0
        %927 = vdwg.mxu0
        %928 = vrot.lane.b32.xlu0 %v760, 120
        %v929 = vpop.permute.xlu0 %928
        %930 = vrot.lane.b32.xlu0 %v760, 88
        %v931 = vpop.permute.xlu0 %930
        %v932 = vsel %vm766, %v929, 0
        %v934 = vsel %vm766, %v931, 0
        %936 = vmatprep.subr.mxu0 0.0
        %937 = vmatpush1.xpose.msra.mxu0 %v934
        %938 = vmatprep.subr.mxu0 0.0
        %939 = vmatpush1.xpose.msra.mxu0 0.0
        %940 = vmatprep.subr.mxu0 0.0
        %941 = vmatpush1.xpose.msra.mxu0 0.0
        %942 = vmatprep.subr.mxu0 0.0
        %943 = vmatpush1.xpose.msra.mxu0 0.0
        %944 = vmatprep.subr.mxu0 0.0
        %945 = vmatpush1.xpose.msra.mxu0 0.0
        %946 = vmatprep.subr.mxu0 0.0
        %947 = vmatpush1.xpose.msra.mxu0 0.0
        %948 = vmatprep.subr.mxu0 0.0
        %949 = vmatpush1.xpose.msra.mxu0 0.0
        %950 = vmatprep.subr.mxu0 0.0
        %951 = vmatpush1.xpose.msra.mxu0 0.0
        %952 = vmatprep.subr.mxu0 0.0
        %953 = vmatpush1.xpose.msra.mxu0 0.0
        %954 = vmatprep.subr.mxu0 0.0
        %955 = vmatpush1.xpose.msra.mxu0 0.0
        %956 = vmatprep.subr.mxu0 0.0
        %957 = vmatpush1.xpose.msra.mxu0 0.0
        %958 = vmatprep.subr.mxu0 0.0
        %959 = vmatpush1.xpose.msra.mxu0 0.0
        %960 = vmatprep.subr.mxu0 0.0
        %961 = vmatpush1.xpose.msra.mxu0 0.0
        %962 = vmatprep.subr.mxu0 0.0
        %963 = vmatpush1.xpose.msra.mxu0 0.0
        %964 = vmatprep.subr.mxu0 0.0
        %965 = vmatpush1.xpose.msra.mxu0 0.0
        %966 = vmatprep.subr.mxu0 0.0
        %967 = vmatpush1.xpose.msra.mxu0 0.0
        %968 = vmatprep.subr.mxu0 0.0
        %969 = vmatpush1.xpose.msra.mxu0 0.0
        %970 = vmatprep.subr.mxu0 0.0
        %971 = vmatpush1.xpose.msra.mxu0 0.0
        %972 = vmatprep.subr.mxu0 0.0
        %973 = vmatpush1.xpose.msra.mxu0 0.0
        %974 = vmatprep.subr.mxu0 0.0
        %975 = vmatpush1.xpose.msra.mxu0 0.0
        %976 = vmatprep.subr.mxu0 0.0
        %977 = vmatpush1.xpose.msra.mxu0 0.0
        %978 = vmatprep.subr.mxu0 0.0
        %979 = vmatpush1.xpose.msra.mxu0 0.0
        %980 = vmatprep.subr.mxu0 0.0
        %981 = vmatpush1.xpose.msra.mxu0 0.0
        %982 = vmatprep.subr.mxu0 0.0
        %983 = vmatpush1.xpose.msra.mxu0 0.0
        %984 = vmatprep.subr.mxu0 0.0
        %985 = vmatpush1.xpose.msra.mxu0 0.0
        %986 = vmatprep.subr.mxu0 0.0
        %987 = vmatpush1.xpose.msra.mxu0 0.0
        %988 = vmatprep.subr.mxu0 0.0
        %989 = vmatpush1.xpose.msra.mxu0 0.0
        %990 = vmatprep.subr.mxu0 0.0
        %991 = vmatpush1.xpose.msra.mxu0 0.0
        %992 = vmatprep.subr.mxu0 0.0
        %993 = vmatpush1.xpose.msra.mxu0 0.0
        %994 = vmatprep.subr.mxu0 0.0
        %995 = vmatpush1.xpose.msra.mxu0 0.0
        %996 = vmatprep.subr.mxu0 0.0
        %997 = vmatpush1.xpose.msra.mxu0 0.0
        %998 = vmatprep.subr.mxu0 0.0
        %999 = vmatpush1.xpose.msra.mxu0 0.0
        %1000 = vmatprep.mubr.f32.mxu0 0.0
        %1001 = vmatmul.mubr.f32.gmra.mrb[0].mxu0 %v932
        %v1002 = vpop.f32.mrb[0].mxu0
        %v1003 = vadd.f32 0.0, %v1002
        %v1004 = vpop.f32.mrb[0].mxu0
        %1005 = vdwg.mxu0
        %v1006 = vsel %vm766, %v1003, -inf
        %1007 = vmax.xlane.f32.xlu0 %v1006
        %v1008 = vpop.xlane.xlu0 %1007
        %v1009 = vsub.f32 %v1003, %v1008
        %v1010 = vmul.f32 %v1009, 1.442695
        %v1011 = vpow.pop %v1010
        %v1012 = vsel %vm766, %v1011, 0.0
        %1013 = vadd.xlane.f32.xlu0 %v1012
        %v1014 = vpop.xlane.xlu0 %1013
        %v1015 = vrcp.pop %v1014
        %v1016 = vmul.f32 %v1011, %v1015
        %1017 = vrot.lane.b32.xlu0 %v760, 56
        %v1018 = vpop.permute.xlu0 %1017
        %v1021 = vsel %vm766, %v1016, 0
        %1023 = vmatprep.subr.mxu0 0.0
        %1024 = vmatpush1.msra.mxu0 %v1018
        %1025 = vmatprep.subr.mxu0 0.0
        %1026 = vmatpush1.msra.mxu0 0.0
        %1027 = vmatprep.subr.mxu0 0.0
        %1028 = vmatpush1.msra.mxu0 0.0
        %1029 = vmatprep.subr.mxu0 0.0
        %1030 = vmatpush1.msra.mxu0 0.0
        %1031 = vmatprep.subr.mxu0 0.0
        %1032 = vmatpush1.msra.mxu0 0.0
        %1033 = vmatprep.subr.mxu0 0.0
        %1034 = vmatpush1.msra.mxu0 0.0
        %1035 = vmatprep.subr.mxu0 0.0
        %1036 = vmatpush1.msra.mxu0 0.0
        %1037 = vmatprep.subr.mxu0 0.0
        %1038 = vmatpush1.msra.mxu0 0.0
        %1039 = vmatprep.subr.mxu0 0.0
        %1040 = vmatpush1.msra.mxu0 0.0
        %1041 = vmatprep.subr.mxu0 0.0
        %1042 = vmatpush1.msra.mxu0 0.0
        %1043 = vmatprep.subr.mxu0 0.0
        %1044 = vmatpush1.msra.mxu0 0.0
        %1045 = vmatprep.subr.mxu0 0.0
        %1046 = vmatpush1.msra.mxu0 0.0
        %1047 = vmatprep.subr.mxu0 0.0
        %1048 = vmatpush1.msra.mxu0 0.0
        %1049 = vmatprep.subr.mxu0 0.0
        %1050 = vmatpush1.msra.mxu0 0.0
        %1051 = vmatprep.subr.mxu0 0.0
        %1052 = vmatpush1.msra.mxu0 0.0
        %1053 = vmatprep.subr.mxu0 0.0
        %1054 = vmatpush1.msra.mxu0 0.0
        %1055 = vmatprep.subr.mxu0 0.0
        %1056 = vmatpush1.msra.mxu0 0.0
        %1057 = vmatprep.subr.mxu0 0.0
        %1058 = vmatpush1.msra.mxu0 0.0
        %1059 = vmatprep.subr.mxu0 0.0
        %1060 = vmatpush1.msra.mxu0 0.0
        %1061 = vmatprep.subr.mxu0 0.0
        %1062 = vmatpush1.msra.mxu0 0.0
        %1063 = vmatprep.subr.mxu0 0.0
        %1064 = vmatpush1.msra.mxu0 0.0
        %1065 = vmatprep.subr.mxu0 0.0
        %1066 = vmatpush1.msra.mxu0 0.0
        %1067 = vmatprep.subr.mxu0 0.0
        %1068 = vmatpush1.msra.mxu0 0.0
        %1069 = vmatprep.subr.mxu0 0.0
        %1070 = vmatpush1.msra.mxu0 0.0
        %1071 = vmatprep.subr.mxu0 0.0
        %1072 = vmatpush1.msra.mxu0 0.0
        %1073 = vmatprep.subr.mxu0 0.0
        %1074 = vmatpush1.msra.mxu0 0.0
        %1075 = vmatprep.subr.mxu0 0.0
        %1076 = vmatpush1.msra.mxu0 0.0
        %1077 = vmatprep.subr.mxu0 0.0
        %1078 = vmatpush1.msra.mxu0 0.0
        %1079 = vmatprep.subr.mxu0 0.0
        %1080 = vmatpush1.msra.mxu0 0.0
        %1081 = vmatprep.subr.mxu0 0.0
        %1082 = vmatpush1.msra.mxu0 0.0
        %1083 = vmatprep.subr.mxu0 0.0
        %1084 = vmatpush1.msra.mxu0 0.0
        %1085 = vmatprep.subr.mxu0 0.0
        %1086 = vmatpush1.msra.mxu0 0.0
        %1087 = vmatprep.mubr.f32.mxu0 0.0
        %1088 = vmatmul.mubr.f32.gmra.mrb[0].mxu0 %v1021
        %v1089 = vpop.f32.mrb[0].mxu0
        %v1090 = vadd.f32 0.0, %v1089
        %v1091 = vpop.f32.mrb[0].mxu0
        %1092 = vdwg.mxu0
        %1093 = vrot.lane.b32.xlu0 %v760, 112
        %v1094 = vpop.permute.xlu0 %1093
        %1095 = vrot.lane.b32.xlu0 %v760, 80
        %v1096 = vpop.permute.xlu0 %1095
        %v1097 = vsel %vm766, %v1094, 0
        %v1099 = vsel %vm766, %v1096, 0
        %1101 = vmatprep.subr.mxu0 0.0
        %1102 = vmatpush1.xpose.msra.mxu0 %v1099
        %1103 = vmatprep.subr.mxu0 0.0
        %1104 = vmatpush1.xpose.msra.mxu0 0.0
        %1105 = vmatprep.subr.mxu0 0.0
        %1106 = vmatpush1.xpose.msra.mxu0 0.0
        %1107 = vmatprep.subr.mxu0 0.0
        %1108 = vmatpush1.xpose.msra.mxu0 0.0
        %1109 = vmatprep.subr.mxu0 0.0
        %1110 = vmatpush1.xpose.msra.mxu0 0.0
        %1111 = vmatprep.subr.mxu0 0.0
        %1112 = vmatpush1.xpose.msra.mxu0 0.0
        %1113 = vmatprep.subr.mxu0 0.0
        %1114 = vmatpush1.xpose.msra.mxu0 0.0
        %1115 = vmatprep.subr.mxu0 0.0
        %1116 = vmatpush1.xpose.msra.mxu0 0.0
        %1117 = vmatprep.subr.mxu0 0.0
        %1118 = vmatpush1.xpose.msra.mxu0 0.0
        %1119 = vmatprep.subr.mxu0 0.0
        %1120 = vmatpush1.xpose.msra.mxu0 0.0
        %1121 = vmatprep.subr.mxu0 0.0
        %1122 = vmatpush1.xpose.msra.mxu0 0.0
        %1123 = vmatprep.subr.mxu0 0.0
        %1124 = vmatpush1.xpose.msra.mxu0 0.0
        %1125 = vmatprep.subr.mxu0 0.0
        %1126 = vmatpush1.xpose.msra.mxu0 0.0
        %1127 = vmatprep.subr.mxu0 0.0
        %1128 = vmatpush1.xpose.msra.mxu0 0.0
        %1129 = vmatprep.subr.mxu0 0.0
        %1130 = vmatpush1.xpose.msra.mxu0 0.0
        %1131 = vmatprep.subr.mxu0 0.0
        %1132 = vmatpush1.xpose.msra.mxu0 0.0
        %1133 = vmatprep.subr.mxu0 0.0
        %1134 = vmatpush1.xpose.msra.mxu0 0.0
        %1135 = vmatprep.subr.mxu0 0.0
        %1136 = vmatpush1.xpose.msra.mxu0 0.0
        %1137 = vmatprep.subr.mxu0 0.0
        %1138 = vmatpush1.xpose.msra.mxu0 0.0
        %1139 = vmatprep.subr.mxu0 0.0
        %1140 = vmatpush1.xpose.msra.mxu0 0.0
        %1141 = vmatprep.subr.mxu0 0.0
        %1142 = vmatpush1.xpose.msra.mxu0 0.0
        %1143 = vmatprep.subr.mxu0 0.0
        %1144 = vmatpush1.xpose.msra.mxu0 0.0
        %1145 = vmatprep.subr.mxu0 0.0
        %1146 = vmatpush1.xpose.msra.mxu0 0.0
        %1147 = vmatprep.subr.mxu0 0.0
        %1148 = vmatpush1.xpose.msra.mxu0 0.0
        %1149 = vmatprep.subr.mxu0 0.0
        %1150 = vmatpush1.xpose.msra.mxu0 0.0
        %1151 = vmatprep.subr.mxu0 0.0
        %1152 = vmatpush1.xpose.msra.mxu0 0.0
        %1153 = vmatprep.subr.mxu0 0.0
        %1154 = vmatpush1.xpose.msra.mxu0 0.0
        %1155 = vmatprep.subr.mxu0 0.0
        %1156 = vmatpush1.xpose.msra.mxu0 0.0
        %1157 = vmatprep.subr.mxu0 0.0
        %1158 = vmatpush1.xpose.msra.mxu0 0.0
        %1159 = vmatprep.subr.mxu0 0.0
        %1160 = vmatpush1.xpose.msra.mxu0 0.0
        %1161 = vmatprep.subr.mxu0 0.0
        %1162 = vmatpush1.xpose.msra.mxu0 0.0
        %1163 = vmatprep.subr.mxu0 0.0
        %1164 = vmatpush1.xpose.msra.mxu0 0.0
        %1165 = vmatprep.mubr.f32.mxu0 0.0
        %1166 = vmatmul.mubr.f32.gmra.mrb[0].mxu0 %v1097
        %v1167 = vpop.f32.mrb[0].mxu0
        %v1168 = vadd.f32 0.0, %v1167
        %v1169 = vpop.f32.mrb[0].mxu0
        %1170 = vdwg.mxu0
        %v1171 = vsel %vm766, %v1168, -inf
        %1172 = vmax.xlane.f32.xlu0 %v1171
        %v1173 = vpop.xlane.xlu0 %1172
        %v1174 = vsub.f32 %v1168, %v1173
        %v1175 = vmul.f32 %v1174, 1.442695
        %v1176 = vpow.pop %v1175
        %v1177 = vsel %vm766, %v1176, 0.0
        %1178 = vadd.xlane.f32.xlu0 %v1177
        %v1179 = vpop.xlane.xlu0 %1178
        %v1180 = vrcp.pop %v1179
        %v1181 = vmul.f32 %v1176, %v1180
        %1182 = vrot.lane.b32.xlu0 %v760, 48
        %v1183 = vpop.permute.xlu0 %1182
        %v1186 = vsel %vm766, %v1181, 0
        %1188 = vmatprep.subr.mxu0 0.0
        %1189 = vmatpush1.msra.mxu0 %v1183
        %1190 = vmatprep.subr.mxu0 0.0
        %1191 = vmatpush1.msra.mxu0 0.0
        %1192 = vmatprep.subr.mxu0 0.0
        %1193 = vmatpush1.msra.mxu0 0.0
        %1194 = vmatprep.subr.mxu0 0.0
        %1195 = vmatpush1.msra.mxu0 0.0
        %1196 = vmatprep.subr.mxu0 0.0
        %1197 = vmatpush1.msra.mxu0 0.0
        %1198 = vmatprep.subr.mxu0 0.0
        %1199 = vmatpush1.msra.mxu0 0.0
        %1200 = vmatprep.subr.mxu0 0.0
        %1201 = vmatpush1.msra.mxu0 0.0
        %1202 = vmatprep.subr.mxu0 0.0
        %1203 = vmatpush1.msra.mxu0 0.0
        %1204 = vmatprep.subr.mxu0 0.0
        %1205 = vmatpush1.msra.mxu0 0.0
        %1206 = vmatprep.subr.mxu0 0.0
        %1207 = vmatpush1.msra.mxu0 0.0
        %1208 = vmatprep.subr.mxu0 0.0
        %1209 = vmatpush1.msra.mxu0 0.0
        %1210 = vmatprep.subr.mxu0 0.0
        %1211 = vmatpush1.msra.mxu0 0.0
        %1212 = vmatprep.subr.mxu0 0.0
        %1213 = vmatpush1.msra.mxu0 0.0
        %1214 = vmatprep.subr.mxu0 0.0
        %1215 = vmatpush1.msra.mxu0 0.0
        %1216 = vmatprep.subr.mxu0 0.0
        %1217 = vmatpush1.msra.mxu0 0.0
        %1218 = vmatprep.subr.mxu0 0.0
        %1219 = vmatpush1.msra.mxu0 0.0
        %1220 = vmatprep.subr.mxu0 0.0
        %1221 = vmatpush1.msra.mxu0 0.0
        %1222 = vmatprep.subr.mxu0 0.0
        %1223 = vmatpush1.msra.mxu0 0.0
        %1224 = vmatprep.subr.mxu0 0.0
        %1225 = vmatpush1.msra.mxu0 0.0
        %1226 = vmatprep.subr.mxu0 0.0
        %1227 = vmatpush1.msra.mxu0 0.0
        %1228 = vmatprep.subr.mxu0 0.0
        %1229 = vmatpush1.msra.mxu0 0.0
        %1230 = vmatprep.subr.mxu0 0.0
        %1231 = vmatpush1.msra.mxu0 0.0
        %1232 = vmatprep.subr.mxu0 0.0
        %1233 = vmatpush1.msra.mxu0 0.0
        %1234 = vmatprep.subr.mxu0 0.0
        %1235 = vmatpush1.msra.mxu0 0.0
        %1236 = vmatprep.subr.mxu0 0.0
        %1237 = vmatpush1.msra.mxu0 0.0
        %1238 = vmatprep.subr.mxu0 0.0
        %1239 = vmatpush1.msra.mxu0 0.0
        %1240 = vmatprep.subr.mxu0 0.0
        %1241 = vmatpush1.msra.mxu0 0.0
        %1242 = vmatprep.subr.mxu0 0.0
        %1243 = vmatpush1.msra.mxu0 0.0
        %1244 = vmatprep.subr.mxu0 0.0
        %1245 = vmatpush1.msra.mxu0 0.0
        %1246 = vmatprep.subr.mxu0 0.0
        %1247 = vmatpush1.msra.mxu0 0.0
        %1248 = vmatprep.subr.mxu0 0.0
        %1249 = vmatpush1.msra.mxu0 0.0
        %1250 = vmatprep.subr.mxu0 0.0
        %1251 = vmatpush1.msra.mxu0 0.0
        %1252 = vmatprep.mubr.f32.mxu0 0.0
        %1253 = vmatmul.mubr.f32.gmra.mrb[0].mxu0 %v1186
        %v1254 = vpop.f32.mrb[0].mxu0
        %v1255 = vadd.f32 0.0, %v1254
        %v1256 = vpop.f32.mrb[0].mxu0
        %1257 = vdwg.mxu0
        %1258 = vrot.lane.b32.xlu0 %v760, 104
        %v1259 = vpop.permute.xlu0 %1258
        %1260 = vrot.lane.b32.xlu0 %v760, 72
        %v1261 = vpop.permute.xlu0 %1260
        %v1262 = vsel %vm766, %v1259, 0
        %v1264 = vsel %vm766, %v1261, 0
        %1266 = vmatprep.subr.mxu0 0.0
        %1267 = vmatpush1.xpose.msra.mxu0 %v1264
        %1268 = vmatprep.subr.mxu0 0.0
        %1269 = vmatpush1.xpose.msra.mxu0 0.0
        %1270 = vmatprep.subr.mxu0 0.0
        %1271 = vmatpush1.xpose.msra.mxu0 0.0
        %1272 = vmatprep.subr.mxu0 0.0
        %1273 = vmatpush1.xpose.msra.mxu0 0.0
        %1274 = vmatprep.subr.mxu0 0.0
        %1275 = vmatpush1.xpose.msra.mxu0 0.0
        %1276 = vmatprep.subr.mxu0 0.0
        %1277 = vmatpush1.xpose.msra.mxu0 0.0
        %1278 = vmatprep.subr.mxu0 0.0
        %1279 = vmatpush1.xpose.msra.mxu0 0.0
        %1280 = vmatprep.subr.mxu0 0.0
        %1281 = vmatpush1.xpose.msra.mxu0 0.0
        %1282 = vmatprep.subr.mxu0 0.0
        %1283 = vmatpush1.xpose.msra.mxu0 0.0
        %1284 = vmatprep.subr.mxu0 0.0
        %1285 = vmatpush1.xpose.msra.mxu0 0.0
        %1286 = vmatprep.subr.mxu0 0.0
        %1287 = vmatpush1.xpose.msra.mxu0 0.0
        %1288 = vmatprep.subr.mxu0 0.0
        %1289 = vmatpush1.xpose.msra.mxu0 0.0
        %1290 = vmatprep.subr.mxu0 0.0
        %1291 = vmatpush1.xpose.msra.mxu0 0.0
        %1292 = vmatprep.subr.mxu0 0.0
        %1293 = vmatpush1.xpose.msra.mxu0 0.0
        %1294 = vmatprep.subr.mxu0 0.0
        %1295 = vmatpush1.xpose.msra.mxu0 0.0
        %1296 = vmatprep.subr.mxu0 0.0
        %1297 = vmatpush1.xpose.msra.mxu0 0.0
        %1298 = vmatprep.subr.mxu0 0.0
        %1299 = vmatpush1.xpose.msra.mxu0 0.0
        %1300 = vmatprep.subr.mxu0 0.0
        %1301 = vmatpush1.xpose.msra.mxu0 0.0
        %1302 = vmatprep.subr.mxu0 0.0
        %1303 = vmatpush1.xpose.msra.mxu0 0.0
        %1304 = vmatprep.subr.mxu0 0.0
        %1305 = vmatpush1.xpose.msra.mxu0 0.0
        %1306 = vmatprep.subr.mxu0 0.0
        %1307 = vmatpush1.xpose.msra.mxu0 0.0
        %1308 = vmatprep.subr.mxu0 0.0
        %1309 = vmatpush1.xpose.msra.mxu0 0.0
        %1310 = vmatprep.subr.mxu0 0.0
        %1311 = vmatpush1.xpose.msra.mxu0 0.0
        %1312 = vmatprep.subr.mxu0 0.0
        %1313 = vmatpush1.xpose.msra.mxu0 0.0
        %1314 = vmatprep.subr.mxu0 0.0
        %1315 = vmatpush1.xpose.msra.mxu0 0.0
        %1316 = vmatprep.subr.mxu0 0.0
        %1317 = vmatpush1.xpose.msra.mxu0 0.0
        %1318 = vmatprep.subr.mxu0 0.0
        %1319 = vmatpush1.xpose.msra.mxu0 0.0
        %1320 = vmatprep.subr.mxu0 0.0
        %1321 = vmatpush1.xpose.msra.mxu0 0.0
        %1322 = vmatprep.subr.mxu0 0.0
        %1323 = vmatpush1.xpose.msra.mxu0 0.0
        %1324 = vmatprep.subr.mxu0 0.0
        %1325 = vmatpush1.xpose.msra.mxu0 0.0
        %1326 = vmatprep.subr.mxu0 0.0
        %1327 = vmatpush1.xpose.msra.mxu0 0.0
        %1328 = vmatprep.subr.mxu0 0.0
        %1329 = vmatpush1.xpose.msra.mxu0 0.0
        %1330 = vmatprep.mubr.f32.mxu0 0.0
        %1331 = vmatmul.mubr.f32.gmra.mrb[0].mxu0 %v1262
        %v1332 = vpop.f32.mrb[0].mxu0
        %v1333 = vadd.f32 0.0, %v1332
        %v1334 = vpop.f32.mrb[0].mxu0
        %1335 = vdwg.mxu0
        %v1336 = vsel %vm766, %v1333, -inf
        %1337 = vmax.xlane.f32.xlu0 %v1336
        %v1338 = vpop.xlane.xlu0 %1337
        %v1339 = vsub.f32 %v1333, %v1338
        %v1340 = vmul.f32 %v1339, 1.442695
        %v1341 = vpow.pop %v1340
        %v1342 = vsel %vm766, %v1341, 0.0
        %1343 = vadd.xlane.f32.xlu0 %v1342
        %v1344 = vpop.xlane.xlu0 %1343
        %v1345 = vrcp.pop %v1344
        %v1346 = vmul.f32 %v1341, %v1345
        %1347 = vrot.lane.b32.xlu0 %v760, 40
        %v1348 = vpop.permute.xlu0 %1347
        %v1351 = vsel %vm766, %v1346, 0
        %1353 = vmatprep.subr.mxu0 0.0
        %1354 = vmatpush1.msra.mxu0 %v1348
        %1355 = vmatprep.subr.mxu0 0.0
        %1356 = vmatpush1.msra.mxu0 0.0
        %1357 = vmatprep.subr.mxu0 0.0
        %1358 = vmatpush1.msra.mxu0 0.0
        %1359 = vmatprep.subr.mxu0 0.0
        %1360 = vmatpush1.msra.mxu0 0.0
        %1361 = vmatprep.subr.mxu0 0.0
        %1362 = vmatpush1.msra.mxu0 0.0
        %1363 = vmatprep.subr.mxu0 0.0
        %1364 = vmatpush1.msra.mxu0 0.0
        %1365 = vmatprep.subr.mxu0 0.0
        %1366 = vmatpush1.msra.mxu0 0.0
        %1367 = vmatprep.subr.mxu0 0.0
        %1368 = vmatpush1.msra.mxu0 0.0
        %1369 = vmatprep.subr.mxu0 0.0
        %1370 = vmatpush1.msra.mxu0 0.0
        %1371 = vmatprep.subr.mxu0 0.0
        %1372 = vmatpush1.msra.mxu0 0.0
        %1373 = vmatprep.subr.mxu0 0.0
        %1374 = vmatpush1.msra.mxu0 0.0
        %1375 = vmatprep.subr.mxu0 0.0
        %1376 = vmatpush1.msra.mxu0 0.0
        %1377 = vmatprep.subr.mxu0 0.0
        %1378 = vmatpush1.msra.mxu0 0.0
        %1379 = vmatprep.subr.mxu0 0.0
        %1380 = vmatpush1.msra.mxu0 0.0
        %1381 = vmatprep.subr.mxu0 0.0
        %1382 = vmatpush1.msra.mxu0 0.0
        %1383 = vmatprep.subr.mxu0 0.0
        %1384 = vmatpush1.msra.mxu0 0.0
        %1385 = vmatprep.subr.mxu0 0.0
        %1386 = vmatpush1.msra.mxu0 0.0
        %1387 = vmatprep.subr.mxu0 0.0
        %1388 = vmatpush1.msra.mxu0 0.0
        %1389 = vmatprep.subr.mxu0 0.0
        %1390 = vmatpush1.msra.mxu0 0.0
        %1391 = vmatprep.subr.mxu0 0.0
        %1392 = vmatpush1.msra.mxu0 0.0
        %1393 = vmatprep.subr.mxu0 0.0
        %1394 = vmatpush1.msra.mxu0 0.0
        %1395 = vmatprep.subr.mxu0 0.0
        %1396 = vmatpush1.msra.mxu0 0.0
        %1397 = vmatprep.subr.mxu0 0.0
        %1398 = vmatpush1.msra.mxu0 0.0
        %1399 = vmatprep.subr.mxu0 0.0
        %1400 = vmatpush1.msra.mxu0 0.0
        %1401 = vmatprep.subr.mxu0 0.0
        %1402 = vmatpush1.msra.mxu0 0.0
        %1403 = vmatprep.subr.mxu0 0.0
        %1404 = vmatpush1.msra.mxu0 0.0
        %1405 = vmatprep.subr.mxu0 0.0
        %1406 = vmatpush1.msra.mxu0 0.0
        %1407 = vmatprep.subr.mxu0 0.0
        %1408 = vmatpush1.msra.mxu0 0.0
        %1409 = vmatprep.subr.mxu0 0.0
        %1410 = vmatpush1.msra.mxu0 0.0
        %1411 = vmatprep.subr.mxu0 0.0
        %1412 = vmatpush1.msra.mxu0 0.0
        %1413 = vmatprep.subr.mxu0 0.0
        %1414 = vmatpush1.msra.mxu0 0.0
        %1415 = vmatprep.subr.mxu0 0.0
        %1416 = vmatpush1.msra.mxu0 0.0
        %1417 = vmatprep.mubr.f32.mxu0 0.0
        %1418 = vmatmul.mubr.f32.gmra.mrb[0].mxu0 %v1351
        %v1419 = vpop.f32.mrb[0].mxu0
        %v1420 = vadd.f32 0.0, %v1419
        %v1421 = vpop.f32.mrb[0].mxu0
        %1422 = vdwg.mxu0
        %1424 = vrot.lane.b32.xlu0 %v1090, 8
        %v1425 = vpop.permute.xlu0 %1424
        %1428 = vrot.lane.b32.xlu0 %v1255, 16
        %v1429 = vpop.permute.xlu0 %1428
        %1432 = vrot.lane.b32.xlu0 %v1420, 24
        %v1433 = vpop.permute.xlu0 %1432
        %v1435 = vsel %vm766, %v925, %v1425
        %vm1436 = vcmask 130048
        %v1437 = vsel %vm1436, %v1435, %v1429
        %vm1438 = vcmask 195584
        %v1439 = vsel %vm1438, %v1437, %v1433
        %v1440 = vld [vmem:[%s614] sm:$0xff]
        %v1441 = vld [vmem:[%s614 + $0x8] sm:$0xff]
        %v1442 = vld [vmem:[%s614 + $0x10] sm:$0xff]
        %v1443 = vld [vmem:[%s614 + $0x18] sm:$0xff]
        %v1444 = vld [vmem:[%s617] sm:$0x1]
        %v1446 = vlaneseq
        %v1447 = vshrl.u32 %v1446, 7
        %v1448 = vsub.s32 0, %v1447
        %v1449 = vrot.slane %v1444, %v1448
        %v1452 = vsel %vm650, %v1439, 0
        %1454 = vmatprep.subr.mxu0 0.0
        %1455 = vmatpush1.msra.mxu0 %v1440
        %1456 = vmatprep.subr.mxu0 0.0
        %1457 = vmatpush1.msra.mxu0 %v1441
        %1458 = vmatprep.subr.mxu0 0.0
        %1459 = vmatpush1.msra.mxu0 %v1442
        %1460 = vmatprep.subr.mxu0 0.0
        %1461 = vmatpush1.msra.mxu0 %v1443
        %1462 = vmatprep.subr.mxu0 0.0
        %1463 = vmatpush1.msra.mxu0 0.0
        %1464 = vmatprep.subr.mxu0 0.0
        %1465 = vmatpush1.msra.mxu0 0.0
        %1466 = vmatprep.subr.mxu0 0.0
        %1467 = vmatpush1.msra.mxu0 0.0
        %1468 = vmatprep.subr.mxu0 0.0
        %1469 = vmatpush1.msra.mxu0 0.0
        %1470 = vmatprep.subr.mxu0 0.0
        %1471 = vmatpush1.msra.mxu0 0.0
        %1472 = vmatprep.subr.mxu0 0.0
        %1473 = vmatpush1.msra.mxu0 0.0
        %1474 = vmatprep.subr.mxu0 0.0
        %1475 = vmatpush1.msra.mxu0 0.0
        %1476 = vmatprep.subr.mxu0 0.0
        %1477 = vmatpush1.msra.mxu0 0.0
        %1478 = vmatprep.subr.mxu0 0.0
        %1479 = vmatpush1.msra.mxu0 0.0
        %1480 = vmatprep.subr.mxu0 0.0
        %1481 = vmatpush1.msra.mxu0 0.0
        %1482 = vmatprep.subr.mxu0 0.0
        %1483 = vmatpush1.msra.mxu0 0.0
        %1484 = vmatprep.subr.mxu0 0.0
        %1485 = vmatpush1.msra.mxu0 0.0
        %1486 = vmatprep.subr.mxu0 0.0
        %1487 = vmatpush1.msra.mxu0 0.0
        %1488 = vmatprep.subr.mxu0 0.0
        %1489 = vmatpush1.msra.mxu0 0.0
        %1490 = vmatprep.subr.mxu0 0.0
        %1491 = vmatpush1.msra.mxu0 0.0
        %1492 = vmatprep.subr.mxu0 0.0
        %1493 = vmatpush1.msra.mxu0 0.0
        %1494 = vmatprep.subr.mxu0 0.0
        %1495 = vmatpush1.msra.mxu0 0.0
        %1496 = vmatprep.subr.mxu0 0.0
        %1497 = vmatpush1.msra.mxu0 0.0
        %1498 = vmatprep.subr.mxu0 0.0
        %1499 = vmatpush1.msra.mxu0 0.0
        %1500 = vmatprep.subr.mxu0 0.0
        %1501 = vmatpush1.msra.mxu0 0.0
        %1502 = vmatprep.subr.mxu0 0.0
        %1503 = vmatpush1.msra.mxu0 0.0
        %1504 = vmatprep.subr.mxu0 0.0
        %1505 = vmatpush1.msra.mxu0 0.0
        %1506 = vmatprep.subr.mxu0 0.0
        %1507 = vmatpush1.msra.mxu0 0.0
        %1508 = vmatprep.subr.mxu0 0.0
        %1509 = vmatpush1.msra.mxu0 0.0
        %1510 = vmatprep.subr.mxu0 0.0
        %1511 = vmatpush1.msra.mxu0 0.0
        %1512 = vmatprep.subr.mxu0 0.0
        %1513 = vmatpush1.msra.mxu0 0.0
        %1514 = vmatprep.subr.mxu0 0.0
        %1515 = vmatpush1.msra.mxu0 0.0
        %1516 = vmatprep.subr.mxu0 0.0
        %1517 = vmatpush1.msra.mxu0 0.0
        %1518 = vmatprep.mubr.f32.mxu0 0.0
        %1519 = vmatmul.mubr.f32.gmra.mrb[0].mxu0 %v1452
        %v1520 = vpop.f32.mrb[0].mxu0
        %v1521 = vadd.f32 %v1449, %v1520
        %v1522 = vpop.f32.mrb[0].mxu0
        %1523 = vdwg.mxu0
        %v1524 = vadd.f32 %v647, %v1521
        %v1525 = vld [vmem:[%s620] sm:$0x1]
        %v1526 = vld [vmem:[%s623] sm:$0x1]
        %v1527 = vsel %vm650, %v1524, 0.0
        %1528 = vadd.xlane.f32.xlu0 %v1527
        %v1529 = vpop.xlane.xlu0 %1528
        %v1530 = vmul.f32 %v1529, %v654
        %v1531 = vsub.f32 %v1524, %v1530
        %v1532 = vmul.f32 %v1531, %v1531
        %v1533 = vsel %vm650, %v1532, 0.0
        %1534 = vadd.xlane.f32.xlu0 %v1533
        %v1535 = vpop.xlane.xlu0 %1534
        %v1536 = vmul.f32 %v1535, %v654
        %v1537 = vadd.f32 %v1536, 1e-06
        %v1538 = vrsqrt.pop %v1537
        %v1539 = vmul.f32 %v1531, %v1538
        %v1541 = vlaneseq
        %v1542 = vshrl.u32 %v1541, 7
        %v1543 = vsub.s32 0, %v1542
        %v1544 = vrot.slane %v1525, %v1543
        %v1546 = vmul.f32 %v1539, %v1544
        %v1548 = vlaneseq
        %v1549 = vshrl.u32 %v1548, 7
        %v1550 = vsub.s32 0, %v1549
        %v1551 = vrot.slane %v1526, %v1550
        %v1553 = vadd.f32 %v1546, %v1551
        %v1554 = vld [vmem:[%s628] sm:$0xff]
        %v1555 = vld [vmem:[%s628 + $0x8] sm:$0xff]
        %v1556 = vld [vmem:[%s628 + $0x10] sm:$0xff]
        %v1557 = vld [vmem:[%s628 + $0x18] sm:$0xff]
        %v1558 = vld [vmem:[%s631] sm:$0x1]
        %v1560 = vlaneseq
        %v1561 = vshrl.u32 %v1560, 7
        %v1562 = vsub.s32 0, %v1561
        %v1563 = vrot.slane %v1558, %v1562
        %v1566 = vsel %vm650, %v1553, 0
        %1568 = vmatprep.subr.mxu0 0.0
        %1569 = vmatpush1.msra.mxu0 %v1554
        %1570 = vmatprep.subr.mxu0 0.0
        %1571 = vmatpush1.msra.mxu0 %v1555
        %1572 = vmatprep.subr.mxu0 0.0
        %1573 = vmatpush1.msra.mxu0 %v1556
        %1574 = vmatprep.subr.mxu0 0.0
        %1575 = vmatpush1.msra.mxu0 %v1557
        %1576 = vmatprep.subr.mxu0 0.0
        %1577 = vmatpush1.msra.mxu0 0.0
        %1578 = vmatprep.subr.mxu0 0.0
        %1579 = vmatpush1.msra.mxu0 0.0
        %1580 = vmatprep.subr.mxu0 0.0
        %1581 = vmatpush1.msra.mxu0 0.0
        %1582 = vmatprep.subr.mxu0 0.0
        %1583 = vmatpush1.msra.mxu0 0.0
        %1584 = vmatprep.subr.mxu0 0.0
        %1585 = vmatpush1.msra.mxu0 0.0
        %1586 = vmatprep.subr.mxu0 0.0
        %1587 = vmatpush1.msra.mxu0 0.0
        %1588 = vmatprep.subr.mxu0 0.0
        %1589 = vmatpush1.msra.mxu0 0.0
        %1590 = vmatprep.subr.mxu0 0.0
        %1591 = vmatpush1.msra.mxu0 0.0
        %1592 = vmatprep.subr.mxu0 0.0
        %1593 = vmatpush1.msra.mxu0 0.0
        %1594 = vmatprep.subr.mxu0 0.0
        %1595 = vmatpush1.msra.mxu0 0.0
        %1596 = vmatprep.subr.mxu0 0.0
        %1597 = vmatpush1.msra.mxu0 0.0
        %1598 = vmatprep.subr.mxu0 0.0
        %1599 = vmatpush1.msra.mxu0 0.0
        %1600 = vmatprep.subr.mxu0 0.0
        %1601 = vmatpush1.msra.mxu0 0.0
        %1602 = vmatprep.subr.mxu0 0.0
        %1603 = vmatpush1.msra.mxu0 0.0
        %1604 = vmatprep.subr.mxu0 0.0
        %1605 = vmatpush1.msra.mxu0 0.0
        %1606 = vmatprep.subr.mxu0 0.0
        %1607 = vmatpush1.msra.mxu0 0.0
        %1608 = vmatprep.subr.mxu0 0.0
        %1609 = vmatpush1.msra.mxu0 0.0
        %1610 = vmatprep.subr.mxu0 0.0
        %1611 = vmatpush1.msra.mxu0 0.0
        %1612 = vmatprep.subr.mxu0 0.0
        %1613 = vmatpush1.msra.mxu0 0.0
        %1614 = vmatprep.subr.mxu0 0.0
        %1615 = vmatpush1.msra.mxu0 0.0
        %1616 = vmatprep.subr.mxu0 0.0
        %1617 = vmatpush1.msra.mxu0 0.0
        %1618 = vmatprep.subr.mxu0 0.0
        %1619 = vmatpush1.msra.mxu0 0.0
        %1620 = vmatprep.subr.mxu0 0.0
        %1621 = vmatpush1.msra.mxu0 0.0
        %1622 = vmatprep.subr.mxu0 0.0
        %1623 = vmatpush1.msra.mxu0 0.0
        %1624 = vmatprep.subr.mxu0 0.0
        %1625 = vmatpush1.msra.mxu0 0.0
        %1626 = vmatprep.subr.mxu0 0.0
        %1627 = vmatpush1.msra.mxu0 0.0
        %1628 = vmatprep.subr.mxu0 0.0
        %1629 = vmatpush1.msra.mxu0 0.0
        %1630 = vmatprep.subr.mxu0 0.0
        %1631 = vmatpush1.msra.mxu0 0.0
        %1632 = vmatprep.mubr.f32.mxu0 0.0
        %1633 = vmatmul.mubr.f32.gmra.mrb[0].mxu0 %v1566
        %v1634 = vpop.f32.mrb[0].mxu0
        %v1635 = vadd.f32 %v1563, %v1634
        %v1636 = vpop.f32.mrb[0].mxu0
        %1637 = vdwg.mxu0
        %v1638 = vmul.f32 %v1635, 0.5
        %v1639 = vmul.f32 %v1635, 0.044715
        %v1640 = vmul.f32 %v1639, %v1635
        %v1641 = vmul.f32 %v1640, %v1635
        %v1642 = vadd.f32 %v1635, %v1641
        %v1643 = vmul.f32 %v1642, 0.7978846
        %v1644 = vtanh.pop %v1643
        %v1645 = vadd.f32 %v1644, 1.0
        %v1646 = vmul.f32 %v1638, %v1645
        %v1647 = vld [vmem:[%s636] sm:$0xff]
        %v1648 = vld [vmem:[%s636 + $0x8] sm:$0xff]
        %v1649 = vld [vmem:[%s636 + $0x10] sm:$0xff]
        %v1650 = vld [vmem:[%s636 + $0x18] sm:$0xff]
        %v1651 = vld [vmem:[%s636 + $0x20] sm:$0xff]
        %v1652 = vld [vmem:[%s636 + $0x28] sm:$0xff]
        %v1653 = vld [vmem:[%s636 + $0x30] sm:$0xff]
        %v1654 = vld [vmem:[%s636 + $0x38] sm:$0xff]
        %v1655 = vld [vmem:[%s639] sm:$0x1]
        %v1657 = vlaneseq
        %v1658 = vshrl.u32 %v1657, 7
        %v1659 = vsub.s32 0, %v1658
        %v1660 = vrot.slane %v1655, %v1659
        %vm1662 = vcmask 523264
        %v1664 = vsel %vm1662, %v1646, 0
        %1666 = vmatprep.subr.mxu0 0.0
        %1667 = vmatpush1.msra.mxu0 %v1647
        %1668 = vmatprep.subr.mxu0 0.0
        %1669 = vmatpush1.msra.mxu0 %v1648
        %1670 = vmatprep.subr.mxu0 0.0
        %1671 = vmatpush1.msra.mxu0 %v1649
        %1672 = vmatprep.subr.mxu0 0.0
        %1673 = vmatpush1.msra.mxu0 %v1650
        %1674 = vmatprep.subr.mxu0 0.0
        %1675 = vmatpush1.msra.mxu0 %v1651
        %1676 = vmatprep.subr.mxu0 0.0
        %1677 = vmatpush1.msra.mxu0 %v1652
        %1678 = vmatprep.subr.mxu0 0.0
        %1679 = vmatpush1.msra.mxu0 %v1653
        %1680 = vmatprep.subr.mxu0 0.0
        %1681 = vmatpush1.msra.mxu0 %v1654
        %1682 = vmatprep.subr.mxu0 0.0
        %1683 = vmatpush1.msra.mxu0 0.0
        %1684 = vmatprep.subr.mxu0 0.0
        %1685 = vmatpush1.msra.mxu0 0.0
        %1686 = vmatprep.subr.mxu0 0.0
        %1687 = vmatpush1.msra.mxu0 0.0
        %1688 = vmatprep.subr.mxu0 0.0
        %1689 = vmatpush1.msra.mxu0 0.0
        %1690 = vmatprep.subr.mxu0 0.0
        %1691 = vmatpush1.msra.mxu0 0.0
        %1692 = vmatprep.subr.mxu0 0.0
        %1693 = vmatpush1.msra.mxu0 0.0
        %1694 = vmatprep.subr.mxu0 0.0
        %1695 = vmatpush1.msra.mxu0 0.0
        %1696 = vmatprep.subr.mxu0 0.0
        %1697 = vmatpush1.msra.mxu0 0.0
        %1698 = vmatprep.subr.mxu0 0.0
        %1699 = vmatpush1.msra.mxu0 0.0
        %1700 = vmatprep.subr.mxu0 0.0
        %1701 = vmatpush1.msra.mxu0 0.0
        %1702 = vmatprep.subr.mxu0 0.0
        %1703 = vmatpush1.msra.mxu0 0.0
        %1704 = vmatprep.subr.mxu0 0.0
        %1705 = vmatpush1.msra.mxu0 0.0
        %1706 = vmatprep.subr.mxu0 0.0
        %1707 = vmatpush1.msra.mxu0 0.0
        %1708 = vmatprep.subr.mxu0 0.0
        %1709 = vmatpush1.msra.mxu0 0.0
        %1710 = vmatprep.subr.mxu0 0.0
        %1711 = vmatpush1.msra.mxu0 0.0
        %1712 = vmatprep.subr.mxu0 0.0
        %1713 = vmatpush1.msra.mxu0 0.0
        %1714 = vmatprep.subr.mxu0 0.0
        %1715 = vmatpush1.msra.mxu0 0.0
        %1716 = vmatprep.subr.mxu0 0.0
        %1717 = vmatpush1.msra.mxu0 0.0
        %1718 = vmatprep.subr.mxu0 0.0
        %1719 = vmatpush1.msra.mxu0 0.0
        %1720 = vmatprep.subr.mxu0 0.0
        %1721 = vmatpush1.msra.mxu0 0.0
        %1722 = vmatprep.subr.mxu0 0.0
        %1723 = vmatpush1.msra.mxu0 0.0
        %1724 = vmatprep.subr.mxu0 0.0
        %1725 = vmatpush1.msra.mxu0 0.0
        %1726 = vmatprep.subr.mxu0 0.0
        %1727 = vmatpush1.msra.mxu0 0.0
        %1728 = vmatprep.subr.mxu0 0.0
        %1729 = vmatpush1.msra.mxu0 0.0
        %1730 = vmatprep.mubr.f32.mxu0 0.0
        %1731 = vmatmul.mubr.f32.gmra.mrb[0].mxu0 %v1664
        %v1732 = vpop.f32.mrb[0].mxu0
        %v1733 = vadd.f32 %v1660, %v1732
        %v1734 = vpop.f32.mrb[0].mxu0
        %1735 = vdwg.mxu0
        %v1736 = vadd.f32 %v1524, %v1733
        %1737 = vst.msk [vmem:[%s591] sm:$0xff] %vm650, %v1736
        %s1738 = sand.u32 %s385, 1
        %s1739 = scalar_lea.sflag [#allocation3], %s1738
        %s1740 = sand.u32 %s385, 1
        %s1741 = smul.addr %s1740, 8
        %s1742 = scalar_lea.vmem [#allocation2], %s1741
        // Predicated region
        $region77: #{siglip_encoder.1} parent=71 // pred_check
          %p1743 = pneg %p395
        $region78: #{siglip_encoder.1} parent=71 // pred_check_branch
          %1745 = sbr.rel (%p1743) target = $region80
        $region79: #{siglip_encoder.1} parent=71 // pred_region
          %s1747 = ssub.s32 128, 128
          %1748 = vsyncadd %s1739, %s1747
          %s1749 = smul.addr %s31, 128
          %s1750 = scalar_lea.hbm %s13, %s1749
          %s1752 = sshll.u32 %s1742, 4
          %s1753 = int_to_ptr.vmem [resolvable:$true] %s1752
          %1755 = dma.vmem_to_hbm [thread:$0]  %s1753, 128, %s1750, %s1739
        $region80: #{siglip_encoder.1} parent=71 // pred_fallthru
          _
      $region72: #{siglip_encoder.1} parent=5 // pred_fallthru
        _
      %p1756 = scmp.le.s32.totalorder 2, %s22
      // Predicated region
      $region81: #{siglip_encoder.1} parent=5 // pred_check
        %p1757 = pneg %p1756
      $region82: #{siglip_encoder.1} parent=5 // pred_check_branch
        %1759 = sbr.rel (%p1757) target = $region84
      $region83: #{siglip_encoder.1} parent=5 // pred_region
        %s1760 = ssub.s32 %s22, 2
        // Predicated region
        $region85: #{siglip_encoder.1} parent=83 // pred_check
          %p1761 = pneg %p401
        $region86: #{siglip_encoder.1} parent=83 // pred_check_branch
          %1763 = sbr.rel (%p1761) target = $region88
        $region87: #{siglip_encoder.1} parent=83 // pred_region
          %s1764 = sand.u32 %s386, 1
          %s1765 = scalar_lea.sflag [#allocation3], %s1764
          %s1766 = sand.u32 %s386, 1
          %s1767 = smul.addr %s1766, 8
          %s1768 = scalar_lea.vmem [#allocation2], %s1767
          %1769 = dma.done %s1765, 128
        $region88: #{siglip_encoder.1} parent=83 // pred_fallthru
          _
      $region84: #{siglip_encoder.1} parent=5 // pred_fallthru
        _
    $region6: #{siglip_encoder.1} parent=1 // loop_footer
      %s26 = sadd.s32 1, %s22
    $region7: #{siglip_encoder.1} parent=1 // loop_footer_branch
      %21 = sbr.rel target = $region3
    $region8: #{siglip_encoder.1} parent=1 // loop_exit
      _
    %1770 = vsyncpa [#allocation3], 1
    %s1771 = scalar_lea.sflag [#allocation3], 1
    %1772 = vsyncpa %s1771, 1

</llo_original>
